<compile_context>
chip_gen: v7x
topology: tpu7x:2x2x1
jax: 0.10.0
libtpu: 0.0.40
codegen_flags: <defaults>
</compile_context>

<pallas_src>
import jax
import jax.numpy as jnp
from jax.experimental import pallas as pl
from jax.experimental.pallas import tpu as pltpu

EPS = 1e-5


# -------------------------------- kernel ------------------------------------

def basic_block_kernel(xp_ref, wb1_ref, g1_ref, b1_ref, wb2_ref, g2_ref, b2_ref,
                       fold_ref, unfold_ref, o_ref, pad_ref):
    N, Hp, WC = xp_ref.shape            # xp: (N, H+2, W*C), H-padded, f32
    H = Hp - 2
    NH = N * H
    C = g1_ref.shape[1]
    Wdim = WC // C
    inv_count = 1.0 / float(N * H * Wdim)

    fold = fold_ref[...]                # (WC, C): sums the W copies of a channel
    unfold = unfold_ref[...]            # (C, WC): broadcasts per-channel to lanes

    def conv3x3(src, wb_ref):
        # src(di) -> (NH, WC) bf16 rows shifted by di-1 in H.
        # Three MXU passes with K = WC (=128) each, f32 accumulation,
        # starting from the first dot (no zero accumulator init).
        acc = jnp.dot(src(0), wb_ref[0], preferred_element_type=jnp.float32)
        acc = acc + jnp.dot(src(1), wb_ref[1], preferred_element_type=jnp.float32)
        acc = acc + jnp.dot(src(2), wb_ref[2], preferred_element_type=jnp.float32)
        return acc                                              # (NH, WC) f32

    def batchnorm(acc, g_ref, b_ref):
        # Training-mode BN with fused affine: single stats pass (sum & sum-sq),
        # then one x*scale + shift pass.
        s1 = jnp.sum(acc, axis=0, keepdims=True)                # (1, WC)
        s2 = jnp.sum(acc * acc, axis=0, keepdims=True)          # (1, WC)
        s1c = jnp.dot(s1, fold, preferred_element_type=jnp.float32)   # (1, C)
        s2c = jnp.dot(s2, fold, preferred_element_type=jnp.float32)   # (1, C)
        mean = s1c * inv_count
        var = s2c * inv_count - mean * mean                     # biased variance
        scale = g_ref[...] * jax.lax.rsqrt(var + EPS)           # (1, C), EUP rsqrt
        shift = b_ref[...] - mean * scale
        scale_l = jnp.dot(scale, unfold, preferred_element_type=jnp.float32)
        shift_l = jnp.dot(shift, unfold, preferred_element_type=jnp.float32)
        return acc * scale_l + shift_l                          # (NH, WC) f32

    # ---- conv1 -> bn1 -> relu ------------------------------------------------
    def src1(di):
        return xp_ref[:, di:di + H, :].reshape(NH, WC).astype(jnp.bfloat16)

    out = batchnorm(conv3x3(src1, wb1_ref), g1_ref, b1_ref)
    out = jnp.maximum(out, 0.0)

    # ---- H-pad the intermediate via VMEM scratch (zero the border rows only) --
    pad_ref[:, 0:1, :] = jnp.zeros((N, 1, WC), jnp.bfloat16)
    pad_ref[:, Hp - 1:Hp, :] = jnp.zeros((N, 1, WC), jnp.bfloat16)
    pad_ref[:, 1:Hp - 1, :] = out.astype(jnp.bfloat16).reshape(N, H, WC)

    # ---- conv2 -> bn2 ----------------------------------------------------------
    def src2(di):
        return pad_ref[:, di:di + H, :].reshape(NH, WC)         # already bf16

    out = batchnorm(conv3x3(src2, wb2_ref), g2_ref, b2_ref)

    # ---- identity shortcut + relu ---------------------------------------------
    ident = xp_ref[:, 1:Hp - 1, :].reshape(NH, WC)              # f32 interior
    out = jnp.maximum(out + ident, 0.0)
    o_ref[...] = out.reshape(N, H, WC).astype(o_ref.dtype)      # lane-dense store


# ------------------------------- wrapper -------------------------------------

def _banded_conv_weights(w_hwio, Wdim):
    """(3,3,Cin,Cout) conv taps -> (3, Wdim*Cin, Wdim*Cout) block-banded matrices
    so a 3x3 'same' conv over the folded (W*C) axis becomes 3 matmuls.
    W-boundary zero padding is encoded by the band structure."""
    mats = []
    for di in range(3):
        m = sum(jnp.kron(jnp.eye(Wdim, k=1 - dj, dtype=jnp.float32),
                         w_hwio[di, dj]) for dj in range(3))
        mats.append(m)
    return jnp.stack(mats)


@jax.jit
def basic_block(x_nchw, w1_oihw, g1, b1, w2_oihw, g2, b2):
    """x_nchw: (N, C, H, W) f32; conv weights in torch OIHW; returns NCHW."""
    N, C, H, W = x_nchw.shape
    WC = W * C

    # NCHW -> (N, H, W*C): channels innermost on the lane axis (lane-dense, W*C=128)
    x_f = jnp.transpose(x_nchw, (0, 2, 3, 1)).reshape(N, H, WC)
    xp = jnp.pad(x_f, ((0, 0), (1, 1), (0, 0)))                 # zero H border

    w1 = jnp.transpose(w1_oihw, (2, 3, 1, 0))                   # OIHW -> HWIO
    w2 = jnp.transpose(w2_oihw, (2, 3, 1, 0))
    wb1 = _banded_conv_weights(w1, W).astype(jnp.bfloat16)      # (3, WC, WC)
    wb2 = _banded_conv_weights(w2, W).astype(jnp.bfloat16)

    g1r, b1r = g1.reshape(1, C), b1.reshape(1, C)
    g2r, b2r = g2.reshape(1, C), b2.reshape(1, C)

    # fold reduces the W groups folded into the lane axis; unfold broadcasts back
    fold = jnp.tile(jnp.eye(C, dtype=jnp.float32), (W, 1))      # (WC, C)
    unfold = jnp.tile(jnp.eye(C, dtype=jnp.float32), (1, W))    # (C, WC)

    vmem = pl.BlockSpec(memory_space=pltpu.MemorySpace.VMEM)
    flops = 2 * 2 * N * H * W * 9 * C * C                       # two 3x3 convs
    bytes_accessed = 4 * (xp.size + N * H * WC) + 2 * (wb1.size + wb2.size)

    out_f = pl.pallas_call(
        basic_block_kernel,
        out_shape=jax.ShapeDtypeStruct((N, H, WC), x_nchw.dtype),
        in_specs=[vmem] * 9,
        out_specs=vmem,
        scratch_shapes=[pltpu.VMEM((N, H + 2, WC), jnp.bfloat16)],
        compiler_params=pltpu.CompilerParams(vmem_limit_bytes=32 * 1024 * 1024),
        cost_estimate=pl.CostEstimate(flops=flops, transcendentals=2 * C,
                                      bytes_accessed=bytes_accessed),
    )(xp, wb1, g1r, b1r, wb2, g2r, b2r, fold, unfold)

    return jnp.transpose(out_f.reshape(N, H, W, C), (0, 3, 1, 2))  # -> NCHW


# ------------------------- pure-JAX reference --------------------------------

def basic_block_ref(x, w1, g1, b1, w2, g2, b2):
    def conv(x, w):
        return jax.lax.conv_general_dilated(
            x, w, (1, 1), ((1, 1), (1, 1)),
            dimension_numbers=("NCHW", "OIHW", "NCHW"))

    def bn(x, g, b):
        mean = x.mean(axis=(0, 2, 3), keepdims=True)
        var = ((x - mean) ** 2).mean(axis=(0, 2, 3), keepdims=True)
        return ((x - mean) * jax.lax.rsqrt(var + EPS) * g.reshape(1, -1, 1, 1)
                + b.reshape(1, -1, 1, 1))

    out = jax.nn.relu(bn(conv(x, w1), g1, b1))
    out = bn(conv(out, w2), g2, b2)
    out = out + x                                               # identity shortcut
    return jax.nn.relu(out)


# --------------------------------- main ---------------------------------------

if __name__ == "__main__":
    N, C, H, W = 2, 8, 16, 16        # in_planes = planes = 8, stride = 1; W*C = 128
    key = jax.random.PRNGKey(0)
    kx, k1, k2 = jax.random.split(key, 3)

    x = jax.random.normal(kx, (N, C, H, W), jnp.float32)

    # conv weights: (planes, in_planes, 3, 3), no bias (as in the module)
    fan_in = C * 3 * 3
    w1 = jax.random.normal(k1, (C, C, 3, 3), jnp.float32) * (2.0 / fan_in) ** 0.5
    w2 = jax.random.normal(k2, (C, C, 3, 3), jnp.float32) * (2.0 / fan_in) ** 0.5
    # BatchNorm2d default init: gamma = 1, beta = 0
    g1 = jnp.ones((C,), jnp.float32); b1 = jnp.zeros((C,), jnp.float32)
    g2 = jnp.ones((C,), jnp.float32); b2 = jnp.zeros((C,), jnp.float32)

    out = basic_block(x, w1, g1, b1, w2, g2, b2)
    out = jax.block_until_ready(out)

    ref = basic_block_ref(x, w1, g1, b1, w2, g2, b2)
    assert out.shape == (N, C, H, W)
    # bf16 MXU inputs (f32 accumulation): tolerance loosened vs the f32 reference.
    maxerr = float(jnp.max(jnp.abs(out - ref)))
    assert jnp.allclose(out, ref, atol=5e-2, rtol=5e-2), maxerr

    print("KERNEL_OK")
</pallas_src>

<mosaic_0001>
module attributes {stable_mosaic.version = 11 : i64} {
  func.func @basic_block_kernel(%arg0: memref<2x18x128xf32, #tpu.memory_space<vmem>>, %arg1: memref<3x128x128xbf16, #tpu.memory_space<vmem>>, %arg2: memref<1x8xf32, #tpu.memory_space<vmem>>, %arg3: memref<1x8xf32, #tpu.memory_space<vmem>>, %arg4: memref<3x128x128xbf16, #tpu.memory_space<vmem>>, %arg5: memref<1x8xf32, #tpu.memory_space<vmem>>, %arg6: memref<1x8xf32, #tpu.memory_space<vmem>>, %arg7: memref<128x8xf32, #tpu.memory_space<vmem>>, %arg8: memref<8x128xf32, #tpu.memory_space<vmem>>, %arg9: memref<2x16x128xf32, #tpu.memory_space<vmem>>, %arg10: memref<2x18x128xbf16, #tpu.memory_space<vmem>>) attributes {dimension_semantics = [], scalar_prefetch = 0 : i64, scratch_operands = 1 : i64, tpu.core_type = #tpu.core_type<tc>} {
    %c0 = arith.constant 0 : index
    %c0_0 = arith.constant 0 : index
    %0 = vector.load %arg7[%c0, %c0_0] : memref<128x8xf32, #tpu.memory_space<vmem>>, vector<128x8xf32>
    %c0_1 = arith.constant 0 : index
    %c0_2 = arith.constant 0 : index
    %1 = vector.load %arg8[%c0_1, %c0_2] : memref<8x128xf32, #tpu.memory_space<vmem>>, vector<8x128xf32>
    %c0_3 = arith.constant 0 : index
    %c0_4 = arith.constant 0 : index
    %c0_5 = arith.constant 0 : index
    %2 = vector.load %arg0[%c0_3, %c0_4, %c0_5] : memref<2x18x128xf32, #tpu.memory_space<vmem>>, vector<2x16x128xf32>
    %3 = vector.shape_cast %2 : vector<2x16x128xf32> to vector<32x128xf32>
    %4 = arith.truncf %3 : vector<32x128xf32> to vector<32x128xbf16>
    %c0_6 = arith.constant 0 : index
    %c0_7 = arith.constant 0 : index
    %c0_8 = arith.constant 0 : index
    %5 = vector.load %arg1[%c0_6, %c0_7, %c0_8] : memref<3x128x128xbf16, #tpu.memory_space<vmem>>, vector<1x128x128xbf16>
    %6 = vector.shape_cast %5 : vector<1x128x128xbf16> to vector<128x128xbf16>
    %cst = arith.constant dense<0.000000e+00> : vector<32x128xf32>
    %7 = tpu.matmul %4, %6, %cst {dimension_numbers = #tpu.dot_dimension_numbers<[1], [0], [0], [1], [0, 0, 1, 1], [], []>} : vector<32x128xbf16>, vector<128x128xbf16>, vector<32x128xf32> -> vector<32x128xf32>
    %c0_9 = arith.constant 0 : index
    %c1 = arith.constant 1 : index
    %c0_10 = arith.constant 0 : index
    %8 = vector.load %arg0[%c0_9, %c1, %c0_10] : memref<2x18x128xf32, #tpu.memory_space<vmem>>, vector<2x16x128xf32>
    %9 = vector.shape_cast %8 : vector<2x16x128xf32> to vector<32x128xf32>
    %10 = arith.truncf %9 : vector<32x128xf32> to vector<32x128xbf16>
    %c1_11 = arith.constant 1 : index
    %c0_12 = arith.constant 0 : index
    %c0_13 = arith.constant 0 : index
    %11 = vector.load %arg1[%c1_11, %c0_12, %c0_13] : memref<3x128x128xbf16, #tpu.memory_space<vmem>>, vector<1x128x128xbf16>
    %12 = vector.shape_cast %11 : vector<1x128x128xbf16> to vector<128x128xbf16>
    %cst_14 = arith.constant dense<0.000000e+00> : vector<32x128xf32>
    %13 = tpu.matmul %10, %12, %cst_14 {dimension_numbers = #tpu.dot_dimension_numbers<[1], [0], [0], [1], [0, 0, 1, 1], [], []>} : vector<32x128xbf16>, vector<128x128xbf16>, vector<32x128xf32> -> vector<32x128xf32>
    %14 = arith.addf %7, %13 : vector<32x128xf32>
    %c0_15 = arith.constant 0 : index
    %c2 = arith.constant 2 : index
    %c0_16 = arith.constant 0 : index
    %15 = vector.load %arg0[%c0_15, %c2, %c0_16] : memref<2x18x128xf32, #tpu.memory_space<vmem>>, vector<2x16x128xf32>
    %16 = vector.shape_cast %15 : vector<2x16x128xf32> to vector<32x128xf32>
    %17 = arith.truncf %16 : vector<32x128xf32> to vector<32x128xbf16>
    %c2_17 = arith.constant 2 : index
    %c0_18 = arith.constant 0 : index
    %c0_19 = arith.constant 0 : index
    %18 = vector.load %arg1[%c2_17, %c0_18, %c0_19] : memref<3x128x128xbf16, #tpu.memory_space<vmem>>, vector<1x128x128xbf16>
    %19 = vector.shape_cast %18 : vector<1x128x128xbf16> to vector<128x128xbf16>
    %cst_20 = arith.constant dense<0.000000e+00> : vector<32x128xf32>
    %20 = tpu.matmul %17, %19, %cst_20 {dimension_numbers = #tpu.dot_dimension_numbers<[1], [0], [0], [1], [0, 0, 1, 1], [], []>} : vector<32x128xbf16>, vector<128x128xbf16>, vector<32x128xf32> -> vector<32x128xf32>
    %21 = arith.addf %14, %20 : vector<32x128xf32>
    %cst_21 = arith.constant dense<0.000000e+00> : vector<128xf32>
    %22 = vector.multi_reduction <add>, %21, %cst_21 [0] : vector<32x128xf32> to vector<128xf32>
    %23 = vector.shape_cast %22 : vector<128xf32> to vector<1x128xf32>
    %24 = arith.mulf %21, %21 : vector<32x128xf32>
    %cst_22 = arith.constant dense<0.000000e+00> : vector<128xf32>
    %25 = vector.multi_reduction <add>, %24, %cst_22 [0] : vector<32x128xf32> to vector<128xf32>
    %26 = vector.shape_cast %25 : vector<128xf32> to vector<1x128xf32>
    %cst_23 = arith.constant dense<0.000000e+00> : vector<1x8xf32>
    %27 = tpu.matmul %23, %0, %cst_23 {dimension_numbers = #tpu.dot_dimension_numbers<[1], [0], [0], [1], [0, 0, 1, 1], [], []>} : vector<1x128xf32>, vector<128x8xf32>, vector<1x8xf32> -> vector<1x8xf32>
    %cst_24 = arith.constant dense<0.000000e+00> : vector<1x8xf32>
    %28 = tpu.matmul %26, %0, %cst_24 {dimension_numbers = #tpu.dot_dimension_numbers<[1], [0], [0], [1], [0, 0, 1, 1], [], []>} : vector<1x128xf32>, vector<128x8xf32>, vector<1x8xf32> -> vector<1x8xf32>
    %cst_25 = arith.constant 0.001953125 : f32
    %29 = vector.broadcast %cst_25 : f32 to vector<1x8xf32>
    %30 = arith.mulf %27, %29 : vector<1x8xf32>
    %cst_26 = arith.constant 0.001953125 : f32
    %31 = vector.broadcast %cst_26 : f32 to vector<1x8xf32>
    %32 = arith.mulf %28, %31 : vector<1x8xf32>
    %33 = arith.mulf %30, %30 : vector<1x8xf32>
    %34 = arith.subf %32, %33 : vector<1x8xf32>
    %c0_27 = arith.constant 0 : index
    %c0_28 = arith.constant 0 : index
    %35 = vector.load %arg2[%c0_27, %c0_28] : memref<1x8xf32, #tpu.memory_space<vmem>>, vector<1x8xf32>
    %cst_29 = arith.constant 9.99999974E-6 : f32
    %36 = vector.broadcast %cst_29 : f32 to vector<1x8xf32>
    %37 = arith.addf %34, %36 : vector<1x8xf32>
    %38 = math.rsqrt %37 : vector<1x8xf32>
    %39 = arith.mulf %35, %38 : vector<1x8xf32>
    %c0_30 = arith.constant 0 : index
    %c0_31 = arith.constant 0 : index
    %40 = vector.load %arg3[%c0_30, %c0_31] : memref<1x8xf32, #tpu.memory_space<vmem>>, vector<1x8xf32>
    %41 = arith.mulf %30, %39 : vector<1x8xf32>
    %42 = arith.subf %40, %41 : vector<1x8xf32>
    %cst_32 = arith.constant dense<0.000000e+00> : vector<1x128xf32>
    %43 = tpu.matmul %39, %1, %cst_32 {dimension_numbers = #tpu.dot_dimension_numbers<[1], [0], [0], [1], [0, 0, 1, 1], [], []>} : vector<1x8xf32>, vector<8x128xf32>, vector<1x128xf32> -> vector<1x128xf32>
    %cst_33 = arith.constant dense<0.000000e+00> : vector<1x128xf32>
    %44 = tpu.matmul %42, %1, %cst_33 {dimension_numbers = #tpu.dot_dimension_numbers<[1], [0], [0], [1], [0, 0, 1, 1], [], []>} : vector<1x8xf32>, vector<8x128xf32>, vector<1x128xf32> -> vector<1x128xf32>
    %45 = vector.broadcast %43 : vector<1x128xf32> to vector<32x128xf32>
    %46 = arith.mulf %21, %45 : vector<32x128xf32>
    %47 = vector.broadcast %44 : vector<1x128xf32> to vector<32x128xf32>
    %48 = arith.addf %46, %47 : vector<32x128xf32>
    %cst_34 = arith.constant 0.000000e+00 : f32
    %49 = vector.broadcast %cst_34 : f32 to vector<32x128xf32>
    %50 = arith.maximumf %48, %49 : vector<32x128xf32>
    %cst_35 = arith.constant 0.000000e+00 : bf16
    %51 = vector.broadcast %cst_35 : bf16 to vector<2x1x128xbf16>
    %c0_36 = arith.constant 0 : index
    %c0_37 = arith.constant 0 : index
    %c0_38 = arith.constant 0 : index
    %52 = vector.load %arg10[%c0_36, %c0_37, %c0_38] : memref<2x18x128xbf16, #tpu.memory_space<vmem>>, vector<2x1x128xbf16>
    tpu.vector_store %arg10[%c0_36, %c0_37, %c0_38], %51 {strides = array<i32>} : memref<2x18x128xbf16, #tpu.memory_space<vmem>>, vector<2x1x128xbf16>,
    %cst_39 = arith.constant 0.000000e+00 : bf16
    %53 = vector.broadcast %cst_39 : bf16 to vector<2x1x128xbf16>
    %c0_40 = arith.constant 0 : index
    %c17 = arith.constant 17 : index
    %c0_41 = arith.constant 0 : index
    %54 = vector.load %arg10[%c0_40, %c17, %c0_41] : memref<2x18x128xbf16, #tpu.memory_space<vmem>>, vector<2x1x128xbf16>
    tpu.vector_store %arg10[%c0_40, %c17, %c0_41], %53 {strides = array<i32>} : memref<2x18x128xbf16, #tpu.memory_space<vmem>>, vector<2x1x128xbf16>,
    %55 = arith.truncf %50 : vector<32x128xf32> to vector<32x128xbf16>
    %56 = vector.shape_cast %55 : vector<32x128xbf16> to vector<2x16x128xbf16>
    %c0_42 = arith.constant 0 : index
    %c1_43 = arith.constant 1 : index
    %c0_44 = arith.constant 0 : index
    %57 = vector.load %arg10[%c0_42, %c1_43, %c0_44] : memref<2x18x128xbf16, #tpu.memory_space<vmem>>, vector<2x16x128xbf16>
    tpu.vector_store %arg10[%c0_42, %c1_43, %c0_44], %56 {strides = array<i32>} : memref<2x18x128xbf16, #tpu.memory_space<vmem>>, vector<2x16x128xbf16>,
    %c0_45 = arith.constant 0 : index
    %c0_46 = arith.constant 0 : index
    %c0_47 = arith.constant 0 : index
    %58 = vector.load %arg10[%c0_45, %c0_46, %c0_47] : memref<2x18x128xbf16, #tpu.memory_space<vmem>>, vector<2x16x128xbf16>
    %59 = vector.shape_cast %58 : vector<2x16x128xbf16> to vector<32x128xbf16>
    %c0_48 = arith.constant 0 : index
    %c0_49 = arith.constant 0 : index
    %c0_50 = arith.constant 0 : index
    %60 = vector.load %arg4[%c0_48, %c0_49, %c0_50] : memref<3x128x128xbf16, #tpu.memory_space<vmem>>, vector<1x128x128xbf16>
    %61 = vector.shape_cast %60 : vector<1x128x128xbf16> to vector<128x128xbf16>
    %cst_51 = arith.constant dense<0.000000e+00> : vector<32x128xf32>
    %62 = tpu.matmul %59, %61, %cst_51 {dimension_numbers = #tpu.dot_dimension_numbers<[1], [0], [0], [1], [0, 0, 1, 1], [], []>} : vector<32x128xbf16>, vector<128x128xbf16>, vector<32x128xf32> -> vector<32x128xf32>
    %c0_52 = arith.constant 0 : index
    %c1_53 = arith.constant 1 : index
    %c0_54 = arith.constant 0 : index
    %63 = vector.load %arg10[%c0_52, %c1_53, %c0_54] : memref<2x18x128xbf16, #tpu.memory_space<vmem>>, vector<2x16x128xbf16>
    %64 = vector.shape_cast %63 : vector<2x16x128xbf16> to vector<32x128xbf16>
    %c1_55 = arith.constant 1 : index
    %c0_56 = arith.constant 0 : index
    %c0_57 = arith.constant 0 : index
    %65 = vector.load %arg4[%c1_55, %c0_56, %c0_57] : memref<3x128x128xbf16, #tpu.memory_space<vmem>>, vector<1x128x128xbf16>
    %66 = vector.shape_cast %65 : vector<1x128x128xbf16> to vector<128x128xbf16>
    %cst_58 = arith.constant dense<0.000000e+00> : vector<32x128xf32>
    %67 = tpu.matmul %64, %66, %cst_58 {dimension_numbers = #tpu.dot_dimension_numbers<[1], [0], [0], [1], [0, 0, 1, 1], [], []>} : vector<32x128xbf16>, vector<128x128xbf16>, vector<32x128xf32> -> vector<32x128xf32>
    %68 = arith.addf %62, %67 : vector<32x128xf32>
    %c0_59 = arith.constant 0 : index
    %c2_60 = arith.constant 2 : index
    %c0_61 = arith.constant 0 : index
    %69 = vector.load %arg10[%c0_59, %c2_60, %c0_61] : memref<2x18x128xbf16, #tpu.memory_space<vmem>>, vector<2x16x128xbf16>
    %70 = vector.shape_cast %69 : vector<2x16x128xbf16> to vector<32x128xbf16>
    %c2_62 = arith.constant 2 : index
    %c0_63 = arith.constant 0 : index
    %c0_64 = arith.constant 0 : index
    %71 = vector.load %arg4[%c2_62, %c0_63, %c0_64] : memref<3x128x128xbf16, #tpu.memory_space<vmem>>, vector<1x128x128xbf16>
    %72 = vector.shape_cast %71 : vector<1x128x128xbf16> to vector<128x128xbf16>
    %cst_65 = arith.constant dense<0.000000e+00> : vector<32x128xf32>
    %73 = tpu.matmul %70, %72, %cst_65 {dimension_numbers = #tpu.dot_dimension_numbers<[1], [0], [0], [1], [0, 0, 1, 1], [], []>} : vector<32x128xbf16>, vector<128x128xbf16>, vector<32x128xf32> -> vector<32x128xf32>
    %74 = arith.addf %68, %73 : vector<32x128xf32>
    %cst_66 = arith.constant dense<0.000000e+00> : vector<128xf32>
    %75 = vector.multi_reduction <add>, %74, %cst_66 [0] : vector<32x128xf32> to vector<128xf32>
    %76 = vector.shape_cast %75 : vector<128xf32> to vector<1x128xf32>
    %77 = arith.mulf %74, %74 : vector<32x128xf32>
    %cst_67 = arith.constant dense<0.000000e+00> : vector<128xf32>
    %78 = vector.multi_reduction <add>, %77, %cst_67 [0] : vector<32x128xf32> to vector<128xf32>
    %79 = vector.shape_cast %78 : vector<128xf32> to vector<1x128xf32>
    %cst_68 = arith.constant dense<0.000000e+00> : vector<1x8xf32>
    %80 = tpu.matmul %76, %0, %cst_68 {dimension_numbers = #tpu.dot_dimension_numbers<[1], [0], [0], [1], [0, 0, 1, 1], [], []>} : vector<1x128xf32>, vector<128x8xf32>, vector<1x8xf32> -> vector<1x8xf32>
    %cst_69 = arith.constant dense<0.000000e+00> : vector<1x8xf32>
    %81 = tpu.matmul %79, %0, %cst_69 {dimension_numbers = #tpu.dot_dimension_numbers<[1], [0], [0], [1], [0, 0, 1, 1], [], []>} : vector<1x128xf32>, vector<128x8xf32>, vector<1x8xf32> -> vector<1x8xf32>
    %cst_70 = arith.constant 0.001953125 : f32
    %82 = vector.broadcast %cst_70 : f32 to vector<1x8xf32>
    %83 = arith.mulf %80, %82 : vector<1x8xf32>
    %cst_71 = arith.constant 0.001953125 : f32
    %84 = vector.broadcast %cst_71 : f32 to vector<1x8xf32>
    %85 = arith.mulf %81, %84 : vector<1x8xf32>
    %86 = arith.mulf %83, %83 : vector<1x8xf32>
    %87 = arith.subf %85, %86 : vector<1x8xf32>
    %c0_72 = arith.constant 0 : index
    %c0_73 = arith.constant 0 : index
    %88 = vector.load %arg5[%c0_72, %c0_73] : memref<1x8xf32, #tpu.memory_space<vmem>>, vector<1x8xf32>
    %cst_74 = arith.constant 9.99999974E-6 : f32
    %89 = vector.broadcast %cst_74 : f32 to vector<1x8xf32>
    %90 = arith.addf %87, %89 : vector<1x8xf32>
    %91 = math.rsqrt %90 : vector<1x8xf32>
    %92 = arith.mulf %88, %91 : vector<1x8xf32>
    %c0_75 = arith.constant 0 : index
    %c0_76 = arith.constant 0 : index
    %93 = vector.load %arg6[%c0_75, %c0_76] : memref<1x8xf32, #tpu.memory_space<vmem>>, vector<1x8xf32>
    %94 = arith.mulf %83, %92 : vector<1x8xf32>
    %95 = arith.subf %93, %94 : vector<1x8xf32>
    %cst_77 = arith.constant dense<0.000000e+00> : vector<1x128xf32>
    %96 = tpu.matmul %92, %1, %cst_77 {dimension_numbers = #tpu.dot_dimension_numbers<[1], [0], [0], [1], [0, 0, 1, 1], [], []>} : vector<1x8xf32>, vector<8x128xf32>, vector<1x128xf32> -> vector<1x128xf32>
    %cst_78 = arith.constant dense<0.000000e+00> : vector<1x128xf32>
    %97 = tpu.matmul %95, %1, %cst_78 {dimension_numbers = #tpu.dot_dimension_numbers<[1], [0], [0], [1], [0, 0, 1, 1], [], []>} : vector<1x8xf32>, vector<8x128xf32>, vector<1x128xf32> -> vector<1x128xf32>
    %98 = vector.broadcast %96 : vector<1x128xf32> to vector<32x128xf32>
    %99 = arith.mulf %74, %98 : vector<32x128xf32>
    %100 = vector.broadcast %97 : vector<1x128xf32> to vector<32x128xf32>
    %101 = arith.addf %99, %100 : vector<32x128xf32>
    %c0_79 = arith.constant 0 : index
    %c1_80 = arith.constant 1 : index
    %c0_81 = arith.constant 0 : index
    %102 = vector.load %arg0[%c0_79, %c1_80, %c0_81] : memref<2x18x128xf32, #tpu.memory_space<vmem>>, vector<2x16x128xf32>
    %103 = vector.shape_cast %102 : vector<2x16x128xf32> to vector<32x128xf32>
    %104 = arith.addf %101, %103 : vector<32x128xf32>
    %cst_82 = arith.constant 0.000000e+00 : f32
    %105 = vector.broadcast %cst_82 : f32 to vector<32x128xf32>
    %106 = arith.maximumf %104, %105 : vector<32x128xf32>
    %107 = vector.shape_cast %106 : vector<32x128xf32> to vector<2x16x128xf32>
    %c0_83 = arith.constant 0 : index
    %c0_84 = arith.constant 0 : index
    %c0_85 = arith.constant 0 : index
    %108 = vector.load %arg9[%c0_83, %c0_84, %c0_85] : memref<2x16x128xf32, #tpu.memory_space<vmem>>, vector<2x16x128xf32>
    tpu.vector_store %arg9[%c0_83, %c0_84, %c0_85], %107 {strides = array<i32>} : memref<2x16x128xf32, #tpu.memory_space<vmem>>, vector<2x16x128xf32>,
    return
  }
}

</mosaic_0001>

<llo_original>
// kernel: tile.19
$region0: #{tile.19}
  %s0 = inlined_call_operand.vmem [shape: f32[8,16,8], index: 0, kind: input, shape index: {}]
  %s1 = inlined_call_operand.vmem [shape: f32[8,128], index: 1, kind: output, shape index: {}]
  %s2 = smov 3
  %v3 = vld [vmem:[%s0] ss:$16 sm:%s2]
  %s4 = smov 12
  %v5 = vld [vmem:[%s0] ss:$16 sm:%s4]
  %vm6 = vcmask 1043458
  %v7 = vsel %vm6, %v5, %v3
  %s8 = smov 48
  %v9 = vld [vmem:[%s0] ss:$16 sm:%s8]
  %vm10 = vcmask 1045508
  %v11 = vsel %vm10, %v9, %v7
  %s12 = smov 192
  %v13 = vld [vmem:[%s0] ss:$16 sm:%s12]
  %vm14 = vcmask 1047558
  %v15 = vsel %vm14, %v13, %v11
  %vm16 = vcmask 64512
  %17 = vst.msk [vmem:[%s1] sm:$0xff] %vm16, %v15
  %s18 = scalar_lea.vmem %s0, 15
  %s19 = smov 3
  %v20 = vld [vmem:[%s18] ss:$16 sm:%s19]
  %s21 = scalar_lea.vmem %s0, 15
  %s22 = smov 12
  %v23 = vld [vmem:[%s21] ss:$16 sm:%s22]
  %vm24 = vcmask 1043458
  %v25 = vsel %vm24, %v23, %v20
  %s26 = scalar_lea.vmem %s0, 15
  %s27 = smov 48
  %v28 = vld [vmem:[%s26] ss:$16 sm:%s27]
  %vm29 = vcmask 1045508
  %v30 = vsel %vm29, %v28, %v25
  %s31 = scalar_lea.vmem %s0, 15
  %s32 = smov 192
  %v33 = vld [vmem:[%s31] ss:$16 sm:%s32]
  %vm34 = vcmask 1047558
  %v35 = vsel %vm34, %v33, %v30
  %36 = vrot.lane.b32.xlu0 %v35, 120
  %v37 = vpop.permute.xlu0 %36
  %vm38 = vcmask 1048512
  %39 = vst.msk [vmem:[%s1] sm:$0xff] %vm38, %v37
  %s40 = scalar_lea.vmem %s0, 14
  %s41 = smov 3
  %v42 = vld [vmem:[%s40] ss:$16 sm:%s41]
  %s43 = scalar_lea.vmem %s0, 14
  %s44 = smov 12
  %v45 = vld [vmem:[%s43] ss:$16 sm:%s44]
  %vm46 = vcmask 1043458
  %v47 = vsel %vm46, %v45, %v42
  %s48 = scalar_lea.vmem %s0, 14
  %s49 = smov 48
  %v50 = vld [vmem:[%s48] ss:$16 sm:%s49]
  %vm51 = vcmask 1045508
  %v52 = vsel %vm51, %v50, %v47
  %s53 = scalar_lea.vmem %s0, 14
  %s54 = smov 192
  %v55 = vld [vmem:[%s53] ss:$16 sm:%s54]
  %vm56 = vcmask 1047558
  %v57 = vsel %vm56, %v55, %v52
  %58 = vrot.lane.b32.xlu0 %v57, 112
  %v59 = vpop.permute.xlu0 %58
  %vm60 = vcmask 982912
  %61 = vst.msk [vmem:[%s1] sm:$0xff] %vm60, %v59
  %s62 = scalar_lea.vmem %s0, 13
  %s63 = smov 3
  %v64 = vld [vmem:[%s62] ss:$16 sm:%s63]
  %s65 = scalar_lea.vmem %s0, 13
  %s66 = smov 12
  %v67 = vld [vmem:[%s65] ss:$16 sm:%s66]
  %vm68 = vcmask 1043458
  %v69 = vsel %vm68, %v67, %v64
  %s70 = scalar_lea.vmem %s0, 13
  %s71 = smov 48
  %v72 = vld [vmem:[%s70] ss:$16 sm:%s71]
  %vm73 = vcmask 1045508
  %v74 = vsel %vm73, %v72, %v69
  %s75 = scalar_lea.vmem %s0, 13
  %s76 = smov 192
  %v77 = vld [vmem:[%s75] ss:$16 sm:%s76]
  %vm78 = vcmask 1047558
  %v79 = vsel %vm78, %v77, %v74
  %80 = vrot.lane.b32.xlu0 %v79, 104
  %v81 = vpop.permute.xlu0 %80
  %vm82 = vcmask 917312
  %83 = vst.msk [vmem:[%s1] sm:$0xff] %vm82, %v81
  %s84 = scalar_lea.vmem %s0, 12
  %s85 = smov 3
  %v86 = vld [vmem:[%s84] ss:$16 sm:%s85]
  %s87 = scalar_lea.vmem %s0, 12
  %s88 = smov 12
  %v89 = vld [vmem:[%s87] ss:$16 sm:%s88]
  %vm90 = vcmask 1043458
  %v91 = vsel %vm90, %v89, %v86
  %s92 = scalar_lea.vmem %s0, 12
  %s93 = smov 48
  %v94 = vld [vmem:[%s92] ss:$16 sm:%s93]
  %vm95 = vcmask 1045508
  %v96 = vsel %vm95, %v94, %v91
  %s97 = scalar_lea.vmem %s0, 12
  %s98 = smov 192
  %v99 = vld [vmem:[%s97] ss:$16 sm:%s98]
  %vm100 = vcmask 1047558
  %v101 = vsel %vm100, %v99, %v96
  %102 = vrot.lane.b32.xlu0 %v101, 96
  %v103 = vpop.permute.xlu0 %102
  %vm104 = vcmask 851712
  %105 = vst.msk [vmem:[%s1] sm:$0xff] %vm104, %v103
  %s106 = scalar_lea.vmem %s0, 11
  %s107 = smov 3
  %v108 = vld [vmem:[%s106] ss:$16 sm:%s107]
  %s109 = scalar_lea.vmem %s0, 11
  %s110 = smov 12
  %v111 = vld [vmem:[%s109] ss:$16 sm:%s110]
  %vm112 = vcmask 1043458
  %v113 = vsel %vm112, %v111, %v108
  %s114 = scalar_lea.vmem %s0, 11
  %s115 = smov 48
  %v116 = vld [vmem:[%s114] ss:$16 sm:%s115]
  %vm117 = vcmask 1045508
  %v118 = vsel %vm117, %v116, %v113
  %s119 = scalar_lea.vmem %s0, 11
  %s120 = smov 192
  %v121 = vld [vmem:[%s119] ss:$16 sm:%s120]
  %vm122 = vcmask 1047558
  %v123 = vsel %vm122, %v121, %v118
  %124 = vrot.lane.b32.xlu0 %v123, 88
  %v125 = vpop.permute.xlu0 %124
  %vm126 = vcmask 786112
  %127 = vst.msk [vmem:[%s1] sm:$0xff] %vm126, %v125
  %s128 = scalar_lea.vmem %s0, 10
  %s129 = smov 3
  %v130 = vld [vmem:[%s128] ss:$16 sm:%s129]
  %s131 = scalar_lea.vmem %s0, 10
  %s132 = smov 12
  %v133 = vld [vmem:[%s131] ss:$16 sm:%s132]
  %vm134 = vcmask 1043458
  %v135 = vsel %vm134, %v133, %v130
  %s136 = scalar_lea.vmem %s0, 10
  %s137 = smov 48
  %v138 = vld [vmem:[%s136] ss:$16 sm:%s137]
  %vm139 = vcmask 1045508
  %v140 = vsel %vm139, %v138, %v135
  %s141 = scalar_lea.vmem %s0, 10
  %s142 = smov 192
  %v143 = vld [vmem:[%s141] ss:$16 sm:%s142]
  %vm144 = vcmask 1047558
  %v145 = vsel %vm144, %v143, %v140
  %146 = vrot.lane.b32.xlu0 %v145, 80
  %v147 = vpop.permute.xlu0 %146
  %vm148 = vcmask 720512
  %149 = vst.msk [vmem:[%s1] sm:$0xff] %vm148, %v147
  %s150 = scalar_lea.vmem %s0, 9
  %s151 = smov 3
  %v152 = vld [vmem:[%s150] ss:$16 sm:%s151]
  %s153 = scalar_lea.vmem %s0, 9
  %s154 = smov 12
  %v155 = vld [vmem:[%s153] ss:$16 sm:%s154]
  %vm156 = vcmask 1043458
  %v157 = vsel %vm156, %v155, %v152
  %s158 = scalar_lea.vmem %s0, 9
  %s159 = smov 48
  %v160 = vld [vmem:[%s158] ss:$16 sm:%s159]
  %vm161 = vcmask 1045508
  %v162 = vsel %vm161, %v160, %v157
  %s163 = scalar_lea.vmem %s0, 9
  %s164 = smov 192
  %v165 = vld [vmem:[%s163] ss:$16 sm:%s164]
  %vm166 = vcmask 1047558
  %v167 = vsel %vm166, %v165, %v162
  %168 = vrot.lane.b32.xlu0 %v167, 72
  %v169 = vpop.permute.xlu0 %168
  %vm170 = vcmask 654912
  %171 = vst.msk [vmem:[%s1] sm:$0xff] %vm170, %v169
  %s172 = scalar_lea.vmem %s0, 8
  %s173 = smov 3
  %v174 = vld [vmem:[%s172] ss:$16 sm:%s173]
  %s175 = scalar_lea.vmem %s0, 8
  %s176 = smov 12
  %v177 = vld [vmem:[%s175] ss:$16 sm:%s176]
  %vm178 = vcmask 1043458
  %v179 = vsel %vm178, %v177, %v174
  %s180 = scalar_lea.vmem %s0, 8
  %s181 = smov 48
  %v182 = vld [vmem:[%s180] ss:$16 sm:%s181]
  %vm183 = vcmask 1045508
  %v184 = vsel %vm183, %v182, %v179
  %s185 = scalar_lea.vmem %s0, 8
  %s186 = smov 192
  %v187 = vld [vmem:[%s185] ss:$16 sm:%s186]
  %vm188 = vcmask 1047558
  %v189 = vsel %vm188, %v187, %v184
  %190 = vrot.lane.b32.xlu0 %v189, 64
  %v191 = vpop.permute.xlu0 %190
  %vm192 = vcmask 589312
  %193 = vst.msk [vmem:[%s1] sm:$0xff] %vm192, %v191
  %s194 = scalar_lea.vmem %s0, 7
  %s195 = smov 3
  %v196 = vld [vmem:[%s194] ss:$16 sm:%s195]
  %s197 = scalar_lea.vmem %s0, 7
  %s198 = smov 12
  %v199 = vld [vmem:[%s197] ss:$16 sm:%s198]
  %vm200 = vcmask 1043458
  %v201 = vsel %vm200, %v199, %v196
  %s202 = scalar_lea.vmem %s0, 7
  %s203 = smov 48
  %v204 = vld [vmem:[%s202] ss:$16 sm:%s203]
  %vm205 = vcmask 1045508
  %v206 = vsel %vm205, %v204, %v201
  %s207 = scalar_lea.vmem %s0, 7
  %s208 = smov 192
  %v209 = vld [vmem:[%s207] ss:$16 sm:%s208]
  %vm210 = vcmask 1047558
  %v211 = vsel %vm210, %v209, %v206
  %212 = vrot.lane.b32.xlu0 %v211, 56
  %v213 = vpop.permute.xlu0 %212
  %vm214 = vcmask 523712
  %215 = vst.msk [vmem:[%s1] sm:$0xff] %vm214, %v213
  %s216 = scalar_lea.vmem %s0, 6
  %s217 = smov 3
  %v218 = vld [vmem:[%s216] ss:$16 sm:%s217]
  %s219 = scalar_lea.vmem %s0, 6
  %s220 = smov 12
  %v221 = vld [vmem:[%s219] ss:$16 sm:%s220]
  %vm222 = vcmask 1043458
  %v223 = vsel %vm222, %v221, %v218
  %s224 = scalar_lea.vmem %s0, 6
  %s225 = smov 48
  %v226 = vld [vmem:[%s224] ss:$16 sm:%s225]
  %vm227 = vcmask 1045508
  %v228 = vsel %vm227, %v226, %v223
  %s229 = scalar_lea.vmem %s0, 6
  %s230 = smov 192
  %v231 = vld [vmem:[%s229] ss:$16 sm:%s230]
  %vm232 = vcmask 1047558
  %v233 = vsel %vm232, %v231, %v228
  %234 = vrot.lane.b32.xlu0 %v233, 48
  %v235 = vpop.permute.xlu0 %234
  %vm236 = vcmask 458112
  %237 = vst.msk [vmem:[%s1] sm:$0xff] %vm236, %v235
  %s238 = scalar_lea.vmem %s0, 5
  %s239 = smov 3
  %v240 = vld [vmem:[%s238] ss:$16 sm:%s239]
  %s241 = scalar_lea.vmem %s0, 5
  %s242 = smov 12
  %v243 = vld [vmem:[%s241] ss:$16 sm:%s242]
  %vm244 = vcmask 1043458
  %v245 = vsel %vm244, %v243, %v240
  %s246 = scalar_lea.vmem %s0, 5
  %s247 = smov 48
  %v248 = vld [vmem:[%s246] ss:$16 sm:%s247]
  %vm249 = vcmask 1045508
  %v250 = vsel %vm249, %v248, %v245
  %s251 = scalar_lea.vmem %s0, 5
  %s252 = smov 192
  %v253 = vld [vmem:[%s251] ss:$16 sm:%s252]
  %vm254 = vcmask 1047558
  %v255 = vsel %vm254, %v253, %v250
  %256 = vrot.lane.b32.xlu0 %v255, 40
  %v257 = vpop.permute.xlu0 %256
  %vm258 = vcmask 392512
  %259 = vst.msk [vmem:[%s1] sm:$0xff] %vm258, %v257
  %s260 = scalar_lea.vmem %s0, 4
  %s261 = smov 3
  %v262 = vld [vmem:[%s260] ss:$16 sm:%s261]
  %s263 = scalar_lea.vmem %s0, 4
  %s264 = smov 12
  %v265 = vld [vmem:[%s263] ss:$16 sm:%s264]
  %vm266 = vcmask 1043458
  %v267 = vsel %vm266, %v265, %v262
  %s268 = scalar_lea.vmem %s0, 4
  %s269 = smov 48
  %v270 = vld [vmem:[%s268] ss:$16 sm:%s269]
  %vm271 = vcmask 1045508
  %v272 = vsel %vm271, %v270, %v267
  %s273 = scalar_lea.vmem %s0, 4
  %s274 = smov 192
  %v275 = vld [vmem:[%s273] ss:$16 sm:%s274]
  %vm276 = vcmask 1047558
  %v277 = vsel %vm276, %v275, %v272
  %278 = vrot.lane.b32.xlu0 %v277, 32
  %v279 = vpop.permute.xlu0 %278
  %vm280 = vcmask 326912
  %281 = vst.msk [vmem:[%s1] sm:$0xff] %vm280, %v279
  %s282 = scalar_lea.vmem %s0, 3
  %s283 = smov 3
  %v284 = vld [vmem:[%s282] ss:$16 sm:%s283]
  %s285 = scalar_lea.vmem %s0, 3
  %s286 = smov 12
  %v287 = vld [vmem:[%s285] ss:$16 sm:%s286]
  %vm288 = vcmask 1043458
  %v289 = vsel %vm288, %v287, %v284
  %s290 = scalar_lea.vmem %s0, 3
  %s291 = smov 48
  %v292 = vld [vmem:[%s290] ss:$16 sm:%s291]
  %vm293 = vcmask 1045508
  %v294 = vsel %vm293, %v292, %v289
  %s295 = scalar_lea.vmem %s0, 3
  %s296 = smov 192
  %v297 = vld [vmem:[%s295] ss:$16 sm:%s296]
  %vm298 = vcmask 1047558
  %v299 = vsel %vm298, %v297, %v294
  %300 = vrot.lane.b32.xlu0 %v299, 24
  %v301 = vpop.permute.xlu0 %300
  %vm302 = vcmask 261312
  %303 = vst.msk [vmem:[%s1] sm:$0xff] %vm302, %v301
  %s304 = scalar_lea.vmem %s0, 2
  %s305 = smov 3
  %v306 = vld [vmem:[%s304] ss:$16 sm:%s305]
  %s307 = scalar_lea.vmem %s0, 2
  %s308 = smov 12
  %v309 = vld [vmem:[%s307] ss:$16 sm:%s308]
  %vm310 = vcmask 1043458
  %v311 = vsel %vm310, %v309, %v306
  %s312 = scalar_lea.vmem %s0, 2
  %s313 = smov 48
  %v314 = vld [vmem:[%s312] ss:$16 sm:%s313]
  %vm315 = vcmask 1045508
  %v316 = vsel %vm315, %v314, %v311
  %s317 = scalar_lea.vmem %s0, 2
  %s318 = smov 192
  %v319 = vld [vmem:[%s317] ss:$16 sm:%s318]
  %vm320 = vcmask 1047558
  %v321 = vsel %vm320, %v319, %v316
  %322 = vrot.lane.b32.xlu0 %v321, 16
  %v323 = vpop.permute.xlu0 %322
  %vm324 = vcmask 195712
  %325 = vst.msk [vmem:[%s1] sm:$0xff] %vm324, %v323
  %s326 = scalar_lea.vmem %s0, 1
  %s327 = smov 3
  %v328 = vld [vmem:[%s326] ss:$16 sm:%s327]
  %s329 = scalar_lea.vmem %s0, 1
  %s330 = smov 12
  %v331 = vld [vmem:[%s329] ss:$16 sm:%s330]
  %vm332 = vcmask 1043458
  %v333 = vsel %vm332, %v331, %v328
  %s334 = scalar_lea.vmem %s0, 1
  %s335 = smov 48
  %v336 = vld [vmem:[%s334] ss:$16 sm:%s335]
  %vm337 = vcmask 1045508
  %v338 = vsel %vm337, %v336, %v333
  %s339 = scalar_lea.vmem %s0, 1
  %s340 = smov 192
  %v341 = vld [vmem:[%s339] ss:$16 sm:%s340]
  %vm342 = vcmask 1047558
  %v343 = vsel %vm342, %v341, %v338
  %344 = vrot.lane.b32.xlu0 %v343, 8
  %v345 = vpop.permute.xlu0 %344
  %vm346 = vcmask 130112
  %347 = vst.msk [vmem:[%s1] sm:$0xff] %vm346, %v345

// kernel: basic_block.1
$region0: #{basic_block.1}
  #allocation0 [shape = 'u32[]', space=smem, size = 0x4, offset = 0x4, fixed_abs, tag = 'smem constant byte address 0x4 - core index']
  #allocation1 [shape = 'u32[144,128]{1,0:T(1,128)}', space=vmem, size = 0x12000, scoped, tag = 'internal scratch']
  #allocation2 [shape = 'bf16[2,18,128]{2,1,0:T(8,128)(2,1)}', space=vmem, size = 0x3000, scoped, tag = 'scratch operand']
  %s0 = inlined_call_operand.vmem [shape: f32[2,18,128], index: 0, kind: input, shape index: {}]
  %s1 = inlined_call_operand.vmem [shape: bf16[3,128,128], index: 1, kind: input, shape index: {}]
  %s2 = inlined_call_operand.vmem [shape: f32[1,8], index: 2, kind: input, shape index: {}]
  %s3 = inlined_call_operand.vmem [shape: f32[1,8], index: 3, kind: input, shape index: {}]
  %s4 = inlined_call_operand.vmem [shape: bf16[3,128,128], index: 4, kind: input, shape index: {}]
  %s5 = inlined_call_operand.vmem [shape: f32[1,8], index: 5, kind: input, shape index: {}]
  %s6 = inlined_call_operand.vmem [shape: f32[1,8], index: 6, kind: input, shape index: {}]
  %s7 = inlined_call_operand.vmem [shape: f32[128,8], index: 7, kind: input, shape index: {}]
  %s8 = inlined_call_operand.vmem [shape: f32[8,128], index: 8, kind: input, shape index: {}]
  %s9 = inlined_call_operand.vmem [shape: f32[2,16,128], index: 9, kind: output, shape index: {}]
  %s10 = sld [smem:[#allocation0]]
  $region46: #{basic_block.1} parent=0
    _
  %s12 = ssub.s32 1, %s10
  %s13 = scalar_select 0, %s12, %s10
  // Predicated region
  $region2: #{basic_block.1} parent=0 // pred_check
    _
  $region3: #{basic_block.1} parent=0 // pred_check_branch
    %15 = sbr.rel (0) target = $region5
  $region4: #{basic_block.1} parent=0 // pred_region
    _
  $region5: #{basic_block.1} parent=0 // pred_fallthru
    _
  // Predicated region
  $region6: #{basic_block.1} parent=0 // pred_check
    _
  $region7: #{basic_block.1} parent=0 // pred_check_branch
    %17 = sbr.rel (0) target = $region9
  $region8: #{basic_block.1} parent=0 // pred_region
    _
  $region9: #{basic_block.1} parent=0 // pred_fallthru
    _
  // Predicated region
  $region10: #{basic_block.1} parent=0 // pred_check
    _
  $region11: #{basic_block.1} parent=0 // pred_check_branch
    %19 = sbr.rel (0) target = $region13
  $region12: #{basic_block.1} parent=0 // pred_region
    _
  $region13: #{basic_block.1} parent=0 // pred_fallthru
    _
  // Predicated region
  $region14: #{basic_block.1} parent=0 // pred_check
    _
  $region15: #{basic_block.1} parent=0 // pred_check_branch
    %21 = sbr.rel (0) target = $region17
  $region16: #{basic_block.1} parent=0 // pred_region
    _
  $region17: #{basic_block.1} parent=0 // pred_fallthru
    _
  // Predicated region
  $region18: #{basic_block.1} parent=0 // pred_check
    _
  $region19: #{basic_block.1} parent=0 // pred_check_branch
    %23 = sbr.rel (0) target = $region21
  $region20: #{basic_block.1} parent=0 // pred_region
    _
  $region21: #{basic_block.1} parent=0 // pred_fallthru
    _
  // Predicated region
  $region22: #{basic_block.1} parent=0 // pred_check
    _
  $region23: #{basic_block.1} parent=0 // pred_check_branch
    %25 = sbr.rel (0) target = $region25
  $region24: #{basic_block.1} parent=0 // pred_region
    _
  $region25: #{basic_block.1} parent=0 // pred_fallthru
    _
  // Predicated region
  $region26: #{basic_block.1} parent=0 // pred_check
    _
  $region27: #{basic_block.1} parent=0 // pred_check_branch
    %27 = sbr.rel (0) target = $region29
  $region28: #{basic_block.1} parent=0 // pred_region
    _
  $region29: #{basic_block.1} parent=0 // pred_fallthru
    _
  // Predicated region
  $region30: #{basic_block.1} parent=0 // pred_check
    _
  $region31: #{basic_block.1} parent=0 // pred_check_branch
    %29 = sbr.rel (0) target = $region33
  $region32: #{basic_block.1} parent=0 // pred_region
    _
  $region33: #{basic_block.1} parent=0 // pred_fallthru
    _
  // Predicated region
  $region34: #{basic_block.1} parent=0 // pred_check
    _
  $region35: #{basic_block.1} parent=0 // pred_check_branch
    %31 = sbr.rel (0) target = $region37
  $region36: #{basic_block.1} parent=0 // pred_region
    _
  $region37: #{basic_block.1} parent=0 // pred_fallthru
    _
  %v33 = vld [vmem:[%s7] sm:$0xff]
  %v34 = vld [vmem:[%s7 + $0x8] sm:$0xff]
  %v35 = vld [vmem:[%s7 + $0x10] sm:$0xff]
  %v36 = vld [vmem:[%s7 + $0x18] sm:$0xff]
  %v37 = vld [vmem:[%s7 + $0x20] sm:$0xff]
  %v38 = vld [vmem:[%s7 + $0x28] sm:$0xff]
  %v39 = vld [vmem:[%s7 + $0x30] sm:$0xff]
  %v40 = vld [vmem:[%s7 + $0x38] sm:$0xff]
  %v41 = vld [vmem:[%s7 + $0x40] sm:$0xff]
  %v42 = vld [vmem:[%s7 + $0x48] sm:$0xff]
  %v43 = vld [vmem:[%s7 + $0x50] sm:$0xff]
  %v44 = vld [vmem:[%s7 + $0x58] sm:$0xff]
  %v45 = vld [vmem:[%s7 + $0x60] sm:$0xff]
  %v46 = vld [vmem:[%s7 + $0x68] sm:$0xff]
  %v47 = vld [vmem:[%s7 + $0x70] sm:$0xff]
  %v48 = vld [vmem:[%s7 + $0x78] sm:$0xff]
  %v49 = vld [vmem:[%s8] sm:$0xff]
  %v50 = vld [vmem:[%s0] sm:$0xff]
  %v51 = vld [vmem:[%s0 + $0x8] sm:$0xff]
  %v52 = vld [vmem:[%s0 + $0x18] sm:$0xff]
  %v53 = vld [vmem:[%s0 + $0x20] sm:$0xff]
  %v54 = vpack.c.bf16 %v51, %v50
  %v55 = vpack.c.bf16 %v53, %v52
  %v56 = vld [vmem:[%s1] sm:$0xf]
  %v57 = vld [vmem:[%s1 + $0x4] sm:$0xf]
  %v58 = vld [vmem:[%s1 + $0x8] sm:$0xf]
  %v59 = vld [vmem:[%s1 + $0xc] sm:$0xf]
  %v60 = vld [vmem:[%s1 + $0x10] sm:$0xf]
  %v61 = vld [vmem:[%s1 + $0x14] sm:$0xf]
  %v62 = vld [vmem:[%s1 + $0x18] sm:$0xf]
  %v63 = vld [vmem:[%s1 + $0x1c] sm:$0xf]
  %v64 = vld [vmem:[%s1 + $0x20] sm:$0xf]
  %v65 = vld [vmem:[%s1 + $0x24] sm:$0xf]
  %v66 = vld [vmem:[%s1 + $0x28] sm:$0xf]
  %v67 = vld [vmem:[%s1 + $0x2c] sm:$0xf]
  %v68 = vld [vmem:[%s1 + $0x30] sm:$0xf]
  %v69 = vld [vmem:[%s1 + $0x34] sm:$0xf]
  %v70 = vld [vmem:[%s1 + $0x38] sm:$0xf]
  %v71 = vld [vmem:[%s1 + $0x3c] sm:$0xf]
  %v72 = vld [vmem:[%s0 + $0x1] sm:$0xff]
  %v73 = vld [vmem:[%s0 + $0x9] sm:$0xff]
  %v74 = vld [vmem:[%s0 + $0x19] sm:$0xff]
  %v75 = vld [vmem:[%s0 + $0x21] sm:$0xff]
  %v76 = vpack.c.bf16 %v73, %v72
  %v77 = vpack.c.bf16 %v75, %v74
  %s78 = scalar_lea.vmem %s1, 64
  %v79 = vld [vmem:[%s78] sm:$0xf]
  %v80 = vld [vmem:[%s78 + $0x4] sm:$0xf]
  %v81 = vld [vmem:[%s78 + $0x8] sm:$0xf]
  %v82 = vld [vmem:[%s78 + $0xc] sm:$0xf]
  %v83 = vld [vmem:[%s78 + $0x10] sm:$0xf]
  %v84 = vld [vmem:[%s78 + $0x14] sm:$0xf]
  %v85 = vld [vmem:[%s78 + $0x18] sm:$0xf]
  %v86 = vld [vmem:[%s78 + $0x1c] sm:$0xf]
  %v87 = vld [vmem:[%s78 + $0x20] sm:$0xf]
  %v88 = vld [vmem:[%s78 + $0x24] sm:$0xf]
  %v89 = vld [vmem:[%s78 + $0x28] sm:$0xf]
  %v90 = vld [vmem:[%s78 + $0x2c] sm:$0xf]
  %v91 = vld [vmem:[%s78 + $0x30] sm:$0xf]
  %v92 = vld [vmem:[%s78 + $0x34] sm:$0xf]
  %v93 = vld [vmem:[%s78 + $0x38] sm:$0xf]
  %v94 = vld [vmem:[%s78 + $0x3c] sm:$0xf]
  %v111 = vunpack.c.l.b16 %v79
  %v112 = vunpack.c.l.b16 %v80
  %v113 = vunpack.c.l.b16 %v81
  %v114 = vunpack.c.l.b16 %v82
  %v115 = vunpack.c.l.b16 %v83
  %v116 = vunpack.c.l.b16 %v84
  %v117 = vunpack.c.l.b16 %v85
  %v118 = vunpack.c.l.b16 %v86
  %v119 = vunpack.c.l.b16 %v87
  %v120 = vunpack.c.l.b16 %v88
  %v121 = vunpack.c.l.b16 %v89
  %v122 = vunpack.c.l.b16 %v90
  %v123 = vunpack.c.l.b16 %v91
  %v124 = vunpack.c.l.b16 %v92
  %v125 = vunpack.c.l.b16 %v93
  %v126 = vunpack.c.l.b16 %v94
  %v127 = vpack.c.b16 %v112, %v111
  %v128 = vpack.c.b16 %v114, %v113
  %v129 = vpack.c.b16 %v116, %v115
  %v130 = vpack.c.b16 %v118, %v117
  %v131 = vpack.c.b16 %v120, %v119
  %v132 = vpack.c.b16 %v122, %v121
  %v133 = vpack.c.b16 %v124, %v123
  %v134 = vpack.c.b16 %v126, %v125
  %143 = vmatprep.subr.bf16.mxu0 0
  %144 = vmatpush1.bf16.msra.mxu0 %v127
  %145 = vmatprep.subr.bf16.mxu0 0
  %146 = vmatpush1.bf16.msra.mxu0 %v128
  %147 = vmatprep.subr.bf16.mxu0 0
  %148 = vmatpush1.bf16.msra.mxu0 %v129
  %149 = vmatprep.subr.bf16.mxu0 0
  %150 = vmatpush1.bf16.msra.mxu0 %v130
  %151 = vmatprep.subr.bf16.mxu0 0
  %152 = vmatpush1.bf16.msra.mxu0 %v131
  %153 = vmatprep.subr.bf16.mxu0 0
  %154 = vmatpush1.bf16.msra.mxu0 %v132
  %155 = vmatprep.subr.bf16.mxu0 0
  %156 = vmatpush1.bf16.msra.mxu0 %v133
  %157 = vmatprep.subr.bf16.mxu0 0
  %158 = vmatpush1.bf16.msra.mxu0 %v134
  %159 = vmatprep.subr.bf16.mxu0 0
  %160 = vmatpush1.bf16.msra.mxu0 0
  %161 = vmatprep.subr.bf16.mxu0 0
  %162 = vmatpush1.bf16.msra.mxu0 0
  %163 = vmatprep.subr.bf16.mxu0 0
  %164 = vmatpush1.bf16.msra.mxu0 0
  %165 = vmatprep.subr.bf16.mxu0 0
  %166 = vmatpush1.bf16.msra.mxu0 0
  %167 = vmatprep.subr.bf16.mxu0 0
  %168 = vmatpush1.bf16.msra.mxu0 0
  %169 = vmatprep.subr.bf16.mxu0 0
  %170 = vmatpush1.bf16.msra.mxu0 0
  %171 = vmatprep.subr.bf16.mxu0 0
  %172 = vmatpush1.bf16.msra.mxu0 0
  %173 = vmatprep.subr.bf16.mxu0 0
  %174 = vmatpush1.bf16.msra.mxu0 0
  %175 = vmatprep.mubr.bf16.mxu0 0
  %176 = vmatmul.mubr.bf16.gmra.mrb[0].mxu0 %v76
  %v177 = vpop.f32.mrb[0].mxu0
  %v178 = vadd.f32 0.0, %v177
  %v179 = vpop.f32.mrb[0].mxu0
  %v180 = vpop.f32.mrb[0].mxu0
  %v181 = vadd.f32 0.0, %v180
  %v182 = vpop.f32.mrb[0].mxu0
  %183 = vmatprep.mubr.bf16.mxu0 0
  %184 = vmatmul.mubr.bf16.gmra.mrb[0].mxu0 %v77
  %v185 = vpop.f32.mrb[0].mxu0
  %v186 = vadd.f32 0.0, %v185
  %v187 = vpop.f32.mrb[0].mxu0
  %v188 = vpop.f32.mrb[0].mxu0
  %v189 = vadd.f32 0.0, %v188
  %v190 = vpop.f32.mrb[0].mxu0
  %191 = vdwg.mxu0
  %v208 = vunpack.c.l.b16 %v56
  %v209 = vunpack.c.l.b16 %v57
  %v210 = vunpack.c.l.b16 %v58
  %v211 = vunpack.c.l.b16 %v59
  %v212 = vunpack.c.l.b16 %v60
  %v213 = vunpack.c.l.b16 %v61
  %v214 = vunpack.c.l.b16 %v62
  %v215 = vunpack.c.l.b16 %v63
  %v216 = vunpack.c.l.b16 %v64
  %v217 = vunpack.c.l.b16 %v65
  %v218 = vunpack.c.l.b16 %v66
  %v219 = vunpack.c.l.b16 %v67
  %v220 = vunpack.c.l.b16 %v68
  %v221 = vunpack.c.l.b16 %v69
  %v222 = vunpack.c.l.b16 %v70
  %v223 = vunpack.c.l.b16 %v71
  %v224 = vpack.c.b16 %v209, %v208
  %v225 = vpack.c.b16 %v211, %v210
  %v226 = vpack.c.b16 %v213, %v212
  %v227 = vpack.c.b16 %v215, %v214
  %v228 = vpack.c.b16 %v217, %v216
  %v229 = vpack.c.b16 %v219, %v218
  %v230 = vpack.c.b16 %v221, %v220
  %v231 = vpack.c.b16 %v223, %v222
  %240 = vmatprep.subr.bf16.mxu0 0
  %241 = vmatpush1.bf16.msra.mxu0 %v224
  %242 = vmatprep.subr.bf16.mxu0 0
  %243 = vmatpush1.bf16.msra.mxu0 %v225
  %244 = vmatprep.subr.bf16.mxu0 0
  %245 = vmatpush1.bf16.msra.mxu0 %v226
  %246 = vmatprep.subr.bf16.mxu0 0
  %247 = vmatpush1.bf16.msra.mxu0 %v227
  %248 = vmatprep.subr.bf16.mxu0 0
  %249 = vmatpush1.bf16.msra.mxu0 %v228
  %250 = vmatprep.subr.bf16.mxu0 0
  %251 = vmatpush1.bf16.msra.mxu0 %v229
  %252 = vmatprep.subr.bf16.mxu0 0
  %253 = vmatpush1.bf16.msra.mxu0 %v230
  %254 = vmatprep.subr.bf16.mxu0 0
  %255 = vmatpush1.bf16.msra.mxu0 %v231
  %256 = vmatprep.subr.bf16.mxu0 0
  %257 = vmatpush1.bf16.msra.mxu0 0
  %258 = vmatprep.subr.bf16.mxu0 0
  %259 = vmatpush1.bf16.msra.mxu0 0
  %260 = vmatprep.subr.bf16.mxu0 0
  %261 = vmatpush1.bf16.msra.mxu0 0
  %262 = vmatprep.subr.bf16.mxu0 0
  %263 = vmatpush1.bf16.msra.mxu0 0
  %264 = vmatprep.subr.bf16.mxu0 0
  %265 = vmatpush1.bf16.msra.mxu0 0
  %266 = vmatprep.subr.bf16.mxu0 0
  %267 = vmatpush1.bf16.msra.mxu0 0
  %268 = vmatprep.subr.bf16.mxu0 0
  %269 = vmatpush1.bf16.msra.mxu0 0
  %270 = vmatprep.subr.bf16.mxu0 0
  %271 = vmatpush1.bf16.msra.mxu0 0
  %272 = vmatprep.mubr.bf16.mxu0 0
  %273 = vmatmul.mubr.bf16.gmra.mrb[0].mxu0 %v54
  %v274 = vpop.f32.mrb[0].mxu0
  %v275 = vadd.f32 %v178, %v274
  %v276 = vpop.f32.mrb[0].mxu0
  %v277 = vpop.f32.mrb[0].mxu0
  %v278 = vadd.f32 %v181, %v277
  %v279 = vpop.f32.mrb[0].mxu0
  %280 = vmatprep.mubr.bf16.mxu0 0
  %281 = vmatmul.mubr.bf16.gmra.mrb[0].mxu0 %v55
  %v282 = vpop.f32.mrb[0].mxu0
  %v283 = vadd.f32 %v186, %v282
  %v284 = vpop.f32.mrb[0].mxu0
  %v285 = vpop.f32.mrb[0].mxu0
  %v286 = vadd.f32 %v189, %v285
  %v287 = vpop.f32.mrb[0].mxu0
  %288 = vdwg.mxu0
  %v289 = vld [vmem:[%s0 + $0x2] sm:$0xff]
  %v290 = vld [vmem:[%s0 + $0xa] sm:$0xff]
  %v291 = vld [vmem:[%s0 + $0x1a] sm:$0xff]
  %v292 = vld [vmem:[%s0 + $0x22] sm:$0xff]
  %v293 = vpack.c.bf16 %v290, %v289
  %v294 = vpack.c.bf16 %v292, %v291
  %s295 = scalar_lea.vmem %s1, 128
  %v296 = vld [vmem:[%s295] sm:$0xf]
  %v297 = vld [vmem:[%s295 + $0x4] sm:$0xf]
  %v298 = vld [vmem:[%s295 + $0x8] sm:$0xf]
  %v299 = vld [vmem:[%s295 + $0xc] sm:$0xf]
  %v300 = vld [vmem:[%s295 + $0x10] sm:$0xf]
  %v301 = vld [vmem:[%s295 + $0x14] sm:$0xf]
  %v302 = vld [vmem:[%s295 + $0x18] sm:$0xf]
  %v303 = vld [vmem:[%s295 + $0x1c] sm:$0xf]
  %v304 = vld [vmem:[%s295 + $0x20] sm:$0xf]
  %v305 = vld [vmem:[%s295 + $0x24] sm:$0xf]
  %v306 = vld [vmem:[%s295 + $0x28] sm:$0xf]
  %v307 = vld [vmem:[%s295 + $0x2c] sm:$0xf]
  %v308 = vld [vmem:[%s295 + $0x30] sm:$0xf]
  %v309 = vld [vmem:[%s295 + $0x34] sm:$0xf]
  %v310 = vld [vmem:[%s295 + $0x38] sm:$0xf]
  %v311 = vld [vmem:[%s295 + $0x3c] sm:$0xf]
  %v328 = vunpack.c.l.b16 %v296
  %v329 = vunpack.c.l.b16 %v297
  %v330 = vunpack.c.l.b16 %v298
  %v331 = vunpack.c.l.b16 %v299
  %v332 = vunpack.c.l.b16 %v300
  %v333 = vunpack.c.l.b16 %v301
  %v334 = vunpack.c.l.b16 %v302
  %v335 = vunpack.c.l.b16 %v303
  %v336 = vunpack.c.l.b16 %v304
  %v337 = vunpack.c.l.b16 %v305
  %v338 = vunpack.c.l.b16 %v306
  %v339 = vunpack.c.l.b16 %v307
  %v340 = vunpack.c.l.b16 %v308
  %v341 = vunpack.c.l.b16 %v309
  %v342 = vunpack.c.l.b16 %v310
  %v343 = vunpack.c.l.b16 %v311
  %v344 = vpack.c.b16 %v329, %v328
  %v345 = vpack.c.b16 %v331, %v330
  %v346 = vpack.c.b16 %v333, %v332
  %v347 = vpack.c.b16 %v335, %v334
  %v348 = vpack.c.b16 %v337, %v336
  %v349 = vpack.c.b16 %v339, %v338
  %v350 = vpack.c.b16 %v341, %v340
  %v351 = vpack.c.b16 %v343, %v342
  %360 = vmatprep.subr.bf16.mxu0 0
  %361 = vmatpush1.bf16.msra.mxu0 %v344
  %362 = vmatprep.subr.bf16.mxu0 0
  %363 = vmatpush1.bf16.msra.mxu0 %v345
  %364 = vmatprep.subr.bf16.mxu0 0
  %365 = vmatpush1.bf16.msra.mxu0 %v346
  %366 = vmatprep.subr.bf16.mxu0 0
  %367 = vmatpush1.bf16.msra.mxu0 %v347
  %368 = vmatprep.subr.bf16.mxu0 0
  %369 = vmatpush1.bf16.msra.mxu0 %v348
  %370 = vmatprep.subr.bf16.mxu0 0
  %371 = vmatpush1.bf16.msra.mxu0 %v349
  %372 = vmatprep.subr.bf16.mxu0 0
  %373 = vmatpush1.bf16.msra.mxu0 %v350
  %374 = vmatprep.subr.bf16.mxu0 0
  %375 = vmatpush1.bf16.msra.mxu0 %v351
  %376 = vmatprep.subr.bf16.mxu0 0
  %377 = vmatpush1.bf16.msra.mxu0 0
  %378 = vmatprep.subr.bf16.mxu0 0
  %379 = vmatpush1.bf16.msra.mxu0 0
  %380 = vmatprep.subr.bf16.mxu0 0
  %381 = vmatpush1.bf16.msra.mxu0 0
  %382 = vmatprep.subr.bf16.mxu0 0
  %383 = vmatpush1.bf16.msra.mxu0 0
  %384 = vmatprep.subr.bf16.mxu0 0
  %385 = vmatpush1.bf16.msra.mxu0 0
  %386 = vmatprep.subr.bf16.mxu0 0
  %387 = vmatpush1.bf16.msra.mxu0 0
  %388 = vmatprep.subr.bf16.mxu0 0
  %389 = vmatpush1.bf16.msra.mxu0 0
  %390 = vmatprep.subr.bf16.mxu0 0
  %391 = vmatpush1.bf16.msra.mxu0 0
  %392 = vmatprep.mubr.bf16.mxu0 0
  %393 = vmatmul.mubr.bf16.gmra.mrb[0].mxu0 %v293
  %v394 = vpop.f32.mrb[0].mxu0
  %v395 = vadd.f32 0.0, %v394
  %v396 = vpop.f32.mrb[0].mxu0
  %v397 = vpop.f32.mrb[0].mxu0
  %v398 = vadd.f32 0.0, %v397
  %v399 = vpop.f32.mrb[0].mxu0
  %400 = vmatprep.mubr.bf16.mxu0 0
  %401 = vmatmul.mubr.bf16.gmra.mrb[0].mxu0 %v294
  %v402 = vpop.f32.mrb[0].mxu0
  %v403 = vadd.f32 0.0, %v402
  %v404 = vpop.f32.mrb[0].mxu0
  %v405 = vpop.f32.mrb[0].mxu0
  %v406 = vadd.f32 0.0, %v405
  %v407 = vpop.f32.mrb[0].mxu0
  %408 = vdwg.mxu0
  %v409 = vadd.f32 %v275, %v395
  %v410 = vadd.f32 %v278, %v398
  %v411 = vadd.f32 %v283, %v403
  %v412 = vadd.f32 %v286, %v406
  %v413 = vadd.f32 %v409, %v410
  %v414 = vadd.f32 %v413, %v411
  %v415 = vadd.f32 %v414, %v412
  %v416 = vrot.slane %v415, 4
  %v417 = vadd.f32 %v415, %v416
  %v418 = vrot.slane %v417, 2
  %v419 = vadd.f32 %v417, %v418
  %v420 = vrot.slane %v419, 1
  %v421 = vadd.f32 %v419, %v420
  %v422 = vmul.f32 %v409, %v409
  %v423 = vmul.f32 %v410, %v410
  %v424 = vmul.f32 %v411, %v411
  %v425 = vmul.f32 %v412, %v412
  %v426 = vadd.f32 %v422, %v423
  %v427 = vadd.f32 %v426, %v424
  %v428 = vadd.f32 %v427, %v425
  %v429 = vrot.slane %v428, 4
  %v430 = vadd.f32 %v428, %v429
  %v431 = vrot.slane %v430, 2
  %v432 = vadd.f32 %v430, %v431
  %v433 = vrot.slane %v432, 1
  %v434 = vadd.f32 %v432, %v433
  %435 = vmatprep.subr.mxu0 0.0
  %436 = vmatpush1.msra.mxu0 %v33
  %437 = vmatprep.subr.mxu0 0.0
  %438 = vmatpush1.msra.mxu0 %v34
  %439 = vmatprep.subr.mxu0 0.0
  %440 = vmatpush1.msra.mxu0 %v35
  %441 = vmatprep.subr.mxu0 0.0
  %442 = vmatpush1.msra.mxu0 %v36
  %443 = vmatprep.subr.mxu0 0.0
  %444 = vmatpush1.msra.mxu0 %v37
  %445 = vmatprep.subr.mxu0 0.0
  %446 = vmatpush1.msra.mxu0 %v38
  %447 = vmatprep.subr.mxu0 0.0
  %448 = vmatpush1.msra.mxu0 %v39
  %449 = vmatprep.subr.mxu0 0.0
  %450 = vmatpush1.msra.mxu0 %v40
  %451 = vmatprep.subr.mxu0 0.0
  %452 = vmatpush1.msra.mxu0 %v41
  %453 = vmatprep.subr.mxu0 0.0
  %454 = vmatpush1.msra.mxu0 %v42
  %455 = vmatprep.subr.mxu0 0.0
  %456 = vmatpush1.msra.mxu0 %v43
  %457 = vmatprep.subr.mxu0 0.0
  %458 = vmatpush1.msra.mxu0 %v44
  %459 = vmatprep.subr.mxu0 0.0
  %460 = vmatpush1.msra.mxu0 %v45
  %461 = vmatprep.subr.mxu0 0.0
  %462 = vmatpush1.msra.mxu0 %v46
  %463 = vmatprep.subr.mxu0 0.0
  %464 = vmatpush1.msra.mxu0 %v47
  %465 = vmatprep.subr.mxu0 0.0
  %466 = vmatpush1.msra.mxu0 %v48
  %467 = vmatprep.subr.mxu0 0.0
  %468 = vmatpush1.msra.mxu0 0.0
  %469 = vmatprep.subr.mxu0 0.0
  %470 = vmatpush1.msra.mxu0 0.0
  %471 = vmatprep.subr.mxu0 0.0
  %472 = vmatpush1.msra.mxu0 0.0
  %473 = vmatprep.subr.mxu0 0.0
  %474 = vmatpush1.msra.mxu0 0.0
  %475 = vmatprep.subr.mxu0 0.0
  %476 = vmatpush1.msra.mxu0 0.0
  %477 = vmatprep.subr.mxu0 0.0
  %478 = vmatpush1.msra.mxu0 0.0
  %479 = vmatprep.subr.mxu0 0.0
  %480 = vmatpush1.msra.mxu0 0.0
  %481 = vmatprep.subr.mxu0 0.0
  %482 = vmatpush1.msra.mxu0 0.0
  %483 = vmatprep.subr.mxu0 0.0
  %484 = vmatpush1.msra.mxu0 0.0
  %485 = vmatprep.subr.mxu0 0.0
  %486 = vmatpush1.msra.mxu0 0.0
  %487 = vmatprep.subr.mxu0 0.0
  %488 = vmatpush1.msra.mxu0 0.0
  %489 = vmatprep.subr.mxu0 0.0
  %490 = vmatpush1.msra.mxu0 0.0
  %491 = vmatprep.subr.mxu0 0.0
  %492 = vmatpush1.msra.mxu0 0.0
  %493 = vmatprep.subr.mxu0 0.0
  %494 = vmatpush1.msra.mxu0 0.0
  %495 = vmatprep.subr.mxu0 0.0
  %496 = vmatpush1.msra.mxu0 0.0
  %497 = vmatprep.subr.mxu0 0.0
  %498 = vmatpush1.msra.mxu0 0.0
  %499 = vmatprep.mubr.f32.mxu0 0.0
  %500 = vmatmul.mubr.f32.gmra.mrb[0].mxu0 %v421
  %v501 = vpop.f32.mrb[0].mxu0
  %v502 = vadd.f32 0.0, %v501
  %v503 = vpop.f32.mrb[0].mxu0
  %504 = vdwg.mxu0
  %505 = vmatprep.subr.mxu0 0.0
  %506 = vmatpush1.msra.mxu0 %v33
  %507 = vmatprep.subr.mxu0 0.0
  %508 = vmatpush1.msra.mxu0 %v34
  %509 = vmatprep.subr.mxu0 0.0
  %510 = vmatpush1.msra.mxu0 %v35
  %511 = vmatprep.subr.mxu0 0.0
  %512 = vmatpush1.msra.mxu0 %v36
  %513 = vmatprep.subr.mxu0 0.0
  %514 = vmatpush1.msra.mxu0 %v37
  %515 = vmatprep.subr.mxu0 0.0
  %516 = vmatpush1.msra.mxu0 %v38
  %517 = vmatprep.subr.mxu0 0.0
  %518 = vmatpush1.msra.mxu0 %v39
  %519 = vmatprep.subr.mxu0 0.0
  %520 = vmatpush1.msra.mxu0 %v40
  %521 = vmatprep.subr.mxu0 0.0
  %522 = vmatpush1.msra.mxu0 %v41
  %523 = vmatprep.subr.mxu0 0.0
  %524 = vmatpush1.msra.mxu0 %v42
  %525 = vmatprep.subr.mxu0 0.0
  %526 = vmatpush1.msra.mxu0 %v43
  %527 = vmatprep.subr.mxu0 0.0
  %528 = vmatpush1.msra.mxu0 %v44
  %529 = vmatprep.subr.mxu0 0.0
  %530 = vmatpush1.msra.mxu0 %v45
  %531 = vmatprep.subr.mxu0 0.0
  %532 = vmatpush1.msra.mxu0 %v46
  %533 = vmatprep.subr.mxu0 0.0
  %534 = vmatpush1.msra.mxu0 %v47
  %535 = vmatprep.subr.mxu0 0.0
  %536 = vmatpush1.msra.mxu0 %v48
  %537 = vmatprep.subr.mxu0 0.0
  %538 = vmatpush1.msra.mxu0 0.0
  %539 = vmatprep.subr.mxu0 0.0
  %540 = vmatpush1.msra.mxu0 0.0
  %541 = vmatprep.subr.mxu0 0.0
  %542 = vmatpush1.msra.mxu0 0.0
  %543 = vmatprep.subr.mxu0 0.0
  %544 = vmatpush1.msra.mxu0 0.0
  %545 = vmatprep.subr.mxu0 0.0
  %546 = vmatpush1.msra.mxu0 0.0
  %547 = vmatprep.subr.mxu0 0.0
  %548 = vmatpush1.msra.mxu0 0.0
  %549 = vmatprep.subr.mxu0 0.0
  %550 = vmatpush1.msra.mxu0 0.0
  %551 = vmatprep.subr.mxu0 0.0
  %552 = vmatpush1.msra.mxu0 0.0
  %553 = vmatprep.subr.mxu0 0.0
  %554 = vmatpush1.msra.mxu0 0.0
  %555 = vmatprep.subr.mxu0 0.0
  %556 = vmatpush1.msra.mxu0 0.0
  %557 = vmatprep.subr.mxu0 0.0
  %558 = vmatpush1.msra.mxu0 0.0
  %559 = vmatprep.subr.mxu0 0.0
  %560 = vmatpush1.msra.mxu0 0.0
  %561 = vmatprep.subr.mxu0 0.0
  %562 = vmatpush1.msra.mxu0 0.0
  %563 = vmatprep.subr.mxu0 0.0
  %564 = vmatpush1.msra.mxu0 0.0
  %565 = vmatprep.subr.mxu0 0.0
  %566 = vmatpush1.msra.mxu0 0.0
  %567 = vmatprep.subr.mxu0 0.0
  %568 = vmatpush1.msra.mxu0 0.0
  %569 = vmatprep.mubr.f32.mxu0 0.0
  %570 = vmatmul.mubr.f32.gmra.mrb[0].mxu0 %v434
  %v571 = vpop.f32.mrb[0].mxu0
  %v572 = vadd.f32 0.0, %v571
  %v573 = vpop.f32.mrb[0].mxu0
  %574 = vdwg.mxu0
  %v575 = vmul.f32 %v502, 0.001953125
  %v576 = vmul.f32 %v572, 0.001953125
  %v577 = vmul.f32 %v575, %v575
  %v578 = vsub.f32 %v576, %v577
  %v579 = vld [vmem:[%s2] sm:$0x1]
  %v580 = vadd.f32 %v578, 1e-05
  %v581 = vrsqrt.pop %v580
  %v582 = vmul.f32 %v579, %v581
  %v583 = vld [vmem:[%s3] sm:$0x1]
  %v584 = vmul.f32 %v575, %v582
  %v585 = vsub.f32 %v583, %v584
  %vm586 = vcmask 64512
  %v588 = vsel %vm586, %v582, 0
  %590 = vmatprep.subr.mxu0 0.0
  %591 = vmatpush1.msra.mxu0 %v49
  %592 = vmatprep.subr.mxu0 0.0
  %593 = vmatpush1.msra.mxu0 0.0
  %594 = vmatprep.subr.mxu0 0.0
  %595 = vmatpush1.msra.mxu0 0.0
  %596 = vmatprep.subr.mxu0 0.0
  %597 = vmatpush1.msra.mxu0 0.0
  %598 = vmatprep.subr.mxu0 0.0
  %599 = vmatpush1.msra.mxu0 0.0
  %600 = vmatprep.subr.mxu0 0.0
  %601 = vmatpush1.msra.mxu0 0.0
  %602 = vmatprep.subr.mxu0 0.0
  %603 = vmatpush1.msra.mxu0 0.0
  %604 = vmatprep.subr.mxu0 0.0
  %605 = vmatpush1.msra.mxu0 0.0
  %606 = vmatprep.subr.mxu0 0.0
  %607 = vmatpush1.msra.mxu0 0.0
  %608 = vmatprep.subr.mxu0 0.0
  %609 = vmatpush1.msra.mxu0 0.0
  %610 = vmatprep.subr.mxu0 0.0
  %611 = vmatpush1.msra.mxu0 0.0
  %612 = vmatprep.subr.mxu0 0.0
  %613 = vmatpush1.msra.mxu0 0.0
  %614 = vmatprep.subr.mxu0 0.0
  %615 = vmatpush1.msra.mxu0 0.0
  %616 = vmatprep.subr.mxu0 0.0
  %617 = vmatpush1.msra.mxu0 0.0
  %618 = vmatprep.subr.mxu0 0.0
  %619 = vmatpush1.msra.mxu0 0.0
  %620 = vmatprep.subr.mxu0 0.0
  %621 = vmatpush1.msra.mxu0 0.0
  %622 = vmatprep.subr.mxu0 0.0
  %623 = vmatpush1.msra.mxu0 0.0
  %624 = vmatprep.subr.mxu0 0.0
  %625 = vmatpush1.msra.mxu0 0.0
  %626 = vmatprep.subr.mxu0 0.0
  %627 = vmatpush1.msra.mxu0 0.0
  %628 = vmatprep.subr.mxu0 0.0
  %629 = vmatpush1.msra.mxu0 0.0
  %630 = vmatprep.subr.mxu0 0.0
  %631 = vmatpush1.msra.mxu0 0.0
  %632 = vmatprep.subr.mxu0 0.0
  %633 = vmatpush1.msra.mxu0 0.0
  %634 = vmatprep.subr.mxu0 0.0
  %635 = vmatpush1.msra.mxu0 0.0
  %636 = vmatprep.subr.mxu0 0.0
  %637 = vmatpush1.msra.mxu0 0.0
  %638 = vmatprep.subr.mxu0 0.0
  %639 = vmatpush1.msra.mxu0 0.0
  %640 = vmatprep.subr.mxu0 0.0
  %641 = vmatpush1.msra.mxu0 0.0
  %642 = vmatprep.subr.mxu0 0.0
  %643 = vmatpush1.msra.mxu0 0.0
  %644 = vmatprep.subr.mxu0 0.0
  %645 = vmatpush1.msra.mxu0 0.0
  %646 = vmatprep.subr.mxu0 0.0
  %647 = vmatpush1.msra.mxu0 0.0
  %648 = vmatprep.subr.mxu0 0.0
  %649 = vmatpush1.msra.mxu0 0.0
  %650 = vmatprep.subr.mxu0 0.0
  %651 = vmatpush1.msra.mxu0 0.0
  %652 = vmatprep.subr.mxu0 0.0
  %653 = vmatpush1.msra.mxu0 0.0
  %654 = vmatprep.mubr.f32.mxu0 0.0
  %655 = vmatmul.mubr.f32.gmra.mrb[0].mxu0 %v588
  %v656 = vpop.f32.mrb[0].mxu0
  %v657 = vadd.f32 0.0, %v656
  %v658 = vpop.f32.mrb[0].mxu0
  %659 = vdwg.mxu0
  %v661 = vsel %vm586, %v585, 0
  %663 = vmatprep.subr.mxu0 0.0
  %664 = vmatpush1.msra.mxu0 %v49
  %665 = vmatprep.subr.mxu0 0.0
  %666 = vmatpush1.msra.mxu0 0.0
  %667 = vmatprep.subr.mxu0 0.0
  %668 = vmatpush1.msra.mxu0 0.0
  %669 = vmatprep.subr.mxu0 0.0
  %670 = vmatpush1.msra.mxu0 0.0
  %671 = vmatprep.subr.mxu0 0.0
  %672 = vmatpush1.msra.mxu0 0.0
  %673 = vmatprep.subr.mxu0 0.0
  %674 = vmatpush1.msra.mxu0 0.0
  %675 = vmatprep.subr.mxu0 0.0
  %676 = vmatpush1.msra.mxu0 0.0
  %677 = vmatprep.subr.mxu0 0.0
  %678 = vmatpush1.msra.mxu0 0.0
  %679 = vmatprep.subr.mxu0 0.0
  %680 = vmatpush1.msra.mxu0 0.0
  %681 = vmatprep.subr.mxu0 0.0
  %682 = vmatpush1.msra.mxu0 0.0
  %683 = vmatprep.subr.mxu0 0.0
  %684 = vmatpush1.msra.mxu0 0.0
  %685 = vmatprep.subr.mxu0 0.0
  %686 = vmatpush1.msra.mxu0 0.0
  %687 = vmatprep.subr.mxu0 0.0
  %688 = vmatpush1.msra.mxu0 0.0
  %689 = vmatprep.subr.mxu0 0.0
  %690 = vmatpush1.msra.mxu0 0.0
  %691 = vmatprep.subr.mxu0 0.0
  %692 = vmatpush1.msra.mxu0 0.0
  %693 = vmatprep.subr.mxu0 0.0
  %694 = vmatpush1.msra.mxu0 0.0
  %695 = vmatprep.subr.mxu0 0.0
  %696 = vmatpush1.msra.mxu0 0.0
  %697 = vmatprep.subr.mxu0 0.0
  %698 = vmatpush1.msra.mxu0 0.0
  %699 = vmatprep.subr.mxu0 0.0
  %700 = vmatpush1.msra.mxu0 0.0
  %701 = vmatprep.subr.mxu0 0.0
  %702 = vmatpush1.msra.mxu0 0.0
  %703 = vmatprep.subr.mxu0 0.0
  %704 = vmatpush1.msra.mxu0 0.0
  %705 = vmatprep.subr.mxu0 0.0
  %706 = vmatpush1.msra.mxu0 0.0
  %707 = vmatprep.subr.mxu0 0.0
  %708 = vmatpush1.msra.mxu0 0.0
  %709 = vmatprep.subr.mxu0 0.0
  %710 = vmatpush1.msra.mxu0 0.0
  %711 = vmatprep.subr.mxu0 0.0
  %712 = vmatpush1.msra.mxu0 0.0
  %713 = vmatprep.subr.mxu0 0.0
  %714 = vmatpush1.msra.mxu0 0.0
  %715 = vmatprep.subr.mxu0 0.0
  %716 = vmatpush1.msra.mxu0 0.0
  %717 = vmatprep.subr.mxu0 0.0
  %718 = vmatpush1.msra.mxu0 0.0
  %719 = vmatprep.subr.mxu0 0.0
  %720 = vmatpush1.msra.mxu0 0.0
  %721 = vmatprep.subr.mxu0 0.0
  %722 = vmatpush1.msra.mxu0 0.0
  %723 = vmatprep.subr.mxu0 0.0
  %724 = vmatpush1.msra.mxu0 0.0
  %725 = vmatprep.subr.mxu0 0.0
  %726 = vmatpush1.msra.mxu0 0.0
  %727 = vmatprep.mubr.f32.mxu0 0.0
  %728 = vmatmul.mubr.f32.gmra.mrb[0].mxu0 %v661
  %v729 = vpop.f32.mrb[0].mxu0
  %v730 = vadd.f32 0.0, %v729
  %v731 = vpop.f32.mrb[0].mxu0
  %732 = vdwg.mxu0
  %v733 = vlaneseq
  %v734 = vshrl.u32 %v733, 7
  %v735 = vsub.s32 0, %v734
  %v736 = vrot.slane %v657, %v735
  %v737 = vmul.f32 %v409, %v736
  %v738 = vmul.f32 %v410, %v736
  %v739 = vmul.f32 %v411, %v736
  %v740 = vmul.f32 %v412, %v736
  %v741 = vlaneseq
  %v742 = vshrl.u32 %v741, 7
  %v743 = vsub.s32 0, %v742
  %v744 = vrot.slane %v730, %v743
  %v745 = vadd.f32 %v737, %v744
  %v746 = vadd.f32 %v738, %v744
  %v747 = vadd.f32 %v739, %v744
  %v748 = vadd.f32 %v740, %v744
  %v749 = vmax.f32 %v745, 0.0
  %v750 = vmax.f32 %v746, 0.0
  %v751 = vmax.f32 %v747, 0.0
  %v752 = vmax.f32 %v748, 0.0
  %vm753 = vcmask 1040384
  %vm754 = vsmask.f32 256
  %vm755 = vmand %vm753, %vm754
  %v756 = vld [vmem:[#allocation2] sm:$0x1]
  %v757 = vsel %vm755, 0, %v756
  %758 = vst [vmem:[#allocation2] sm:$0x1] %v757
  %v759 = vld [vmem:[#allocation2 + $0xc] sm:$0x1]
  %v760 = vsel %vm755, 0, %v759
  %761 = vst [vmem:[#allocation2 + $0xc] sm:$0x1] %v760
  %vm762 = vsmask.f32 7938
  %vm763 = vmand %vm753, %vm762
  %v764 = vld [vmem:[#allocation2 + $0x8] sm:$0x1]
  %v765 = vsel %vm763, 0, %v764
  %766 = vst [vmem:[#allocation2 + $0x8] sm:$0x1] %v765
  %v767 = vld [vmem:[#allocation2 + $0x14] sm:$0x1]
  %v768 = vsel %vm763, 0, %v767
  %769 = vst [vmem:[#allocation2 + $0x14] sm:$0x1] %v768
  %v770 = vpack.c.bf16 %v750, %v749
  %v771 = vpack.c.bf16 %v752, %v751
  %v774 = vunpack.c.l.b16 %v770
  %v775 = vunpack.c.h.b16 %v770
  %v776 = vunpack.c.l.b16 %v771
  %v777 = vunpack.c.h.b16 %v771
  %v778 = vpack.c.b16 %v774, %v774
  %v779 = vpack.c.b16 %v775, %v775
  %v780 = vpack.c.b16 %v776, %v776
  %v781 = vpack.c.b16 %v777, %v777
  %vm782 = vsmask.f32 4368
  %vm783 = vmor %vm754, %vm782
  %v785 = vshrl.u32 %v778, 16
  %v787 = vrot.slane %v785, 7
  %v788 = vshll.u32 %v778, 16
  %v790 = vor.u32 %v787, %v788
  %v791 = vrot.slane %v787, 4
  %v793 = vshrl.u32 %v779, 16
  %v795 = vrot.slane %v793, 7
  %v796 = vshll.u32 %v779, 16
  %v798 = vor.u32 %v795, %v796
  %v799 = vsel %vm783, %v791, %v798
  %v800 = vrot.slane %v795, 4
  %v802 = vshrl.u32 %v780, 16
  %v804 = vrot.slane %v802, 7
  %v805 = vshll.u32 %v780, 16
  %v807 = vor.u32 %v804, %v805
  %v808 = vrot.slane %v804, 4
  %v810 = vshrl.u32 %v781, 16
  %v812 = vrot.slane %v810, 7
  %v813 = vshll.u32 %v781, 16
  %v815 = vor.u32 %v812, %v813
  %v816 = vsel %vm783, %v808, %v815
  %v817 = vrot.slane %v812, 4
  %vm824 = vcmask 1043456
  %vm825 = vmand %vm824, %vm762
  %v826 = vld [vmem:[#allocation2] sm:$0xf]
  %v827 = vsel %vm825, %v790, %v826
  %828 = vst [vmem:[#allocation2] sm:$0xf] %v827
  %829 = vst [vmem:[#allocation2 + $0x4] sm:$0xf] %v799
  %v830 = vld [vmem:[#allocation2 + $0x8] sm:$0x1]
  %v831 = vsel %vm755, %v800, %v830
  %832 = vst [vmem:[#allocation2 + $0x8] sm:$0x1] %v831
  %v833 = vld [vmem:[#allocation2 + $0xc] sm:$0xf]
  %v834 = vsel %vm825, %v807, %v833
  %835 = vst [vmem:[#allocation2 + $0xc] sm:$0xf] %v834
  %836 = vst [vmem:[#allocation2 + $0x10] sm:$0xf] %v816
  %v837 = vld [vmem:[#allocation2 + $0x14] sm:$0x1]
  %v838 = vsel %vm755, %v817, %v837
  %839 = vst [vmem:[#allocation2 + $0x14] sm:$0x1] %v838
  %v840 = vld [vmem:[#allocation2] sm:$0xf]
  %v841 = vld [vmem:[#allocation2 + $0x4] sm:$0xf]
  %v842 = vld [vmem:[#allocation2 + $0xc] sm:$0xf]
  %v843 = vld [vmem:[#allocation2 + $0x10] sm:$0xf]
  %v844 = vld [vmem:[%s4] sm:$0xf]
  %v845 = vld [vmem:[%s4 + $0x4] sm:$0xf]
  %v846 = vld [vmem:[%s4 + $0x8] sm:$0xf]
  %v847 = vld [vmem:[%s4 + $0xc] sm:$0xf]
  %v848 = vld [vmem:[%s4 + $0x10] sm:$0xf]
  %v849 = vld [vmem:[%s4 + $0x14] sm:$0xf]
  %v850 = vld [vmem:[%s4 + $0x18] sm:$0xf]
  %v851 = vld [vmem:[%s4 + $0x1c] sm:$0xf]
  %v852 = vld [vmem:[%s4 + $0x20] sm:$0xf]
  %v853 = vld [vmem:[%s4 + $0x24] sm:$0xf]
  %v854 = vld [vmem:[%s4 + $0x28] sm:$0xf]
  %v855 = vld [vmem:[%s4 + $0x2c] sm:$0xf]
  %v856 = vld [vmem:[%s4 + $0x30] sm:$0xf]
  %v857 = vld [vmem:[%s4 + $0x34] sm:$0xf]
  %v858 = vld [vmem:[%s4 + $0x38] sm:$0xf]
  %v859 = vld [vmem:[%s4 + $0x3c] sm:$0xf]
  %v860 = vld [vmem:[#allocation2 + $0x8] sm:$0x1]
  %v861 = vld [vmem:[#allocation2 + $0x14] sm:$0x1]
  %vm862 = vsmask.f32 3328
  %vm863 = vsmask.f32 7440
  %vm864 = vmor %vm862, %vm863
  %v866 = vshrl.u32 %v840, 16
  %v868 = vrot.slane %v866, 4
  %v869 = vshll.u32 %v840, 16
  %v871 = vrot.slane %v869, 5
  %v872 = vor.u32 %v868, %v871
  %v873 = vrot.slane %v872, 4
  %v875 = vshll.u32 %v841, 16
  %v877 = vrot.slane %v875, 5
  %v878 = vsel %vm864, %v873, %v877
  %v879 = vshrl.u32 %v841, 16
  %v881 = vrot.slane %v879, 4
  %v882 = vor.u32 %v881, %v877
  %v883 = vrot.slane %v882, 4
  %v885 = vshll.u32 %v860, 16
  %v887 = vrot.slane %v885, 5
  %v888 = vsel %vm864, %v883, %v887
  %v890 = vshrl.u32 %v842, 16
  %v892 = vrot.slane %v890, 4
  %v893 = vshll.u32 %v842, 16
  %v895 = vrot.slane %v893, 5
  %v896 = vor.u32 %v892, %v895
  %v897 = vrot.slane %v896, 4
  %v899 = vshll.u32 %v843, 16
  %v901 = vrot.slane %v899, 5
  %v902 = vsel %vm864, %v897, %v901
  %v903 = vshrl.u32 %v843, 16
  %v905 = vrot.slane %v903, 4
  %v906 = vor.u32 %v905, %v901
  %v907 = vrot.slane %v906, 4
  %v909 = vshll.u32 %v861, 16
  %v911 = vrot.slane %v909, 5
  %v912 = vsel %vm864, %v907, %v911
  %s913 = scalar_lea.vmem %s4, 64
  %v914 = vld [vmem:[%s913] sm:$0xf]
  %v915 = vld [vmem:[%s913 + $0x4] sm:$0xf]
  %v916 = vld [vmem:[%s913 + $0x8] sm:$0xf]
  %v917 = vld [vmem:[%s913 + $0xc] sm:$0xf]
  %v918 = vld [vmem:[%s913 + $0x10] sm:$0xf]
  %v919 = vld [vmem:[%s913 + $0x14] sm:$0xf]
  %v920 = vld [vmem:[%s913 + $0x18] sm:$0xf]
  %v921 = vld [vmem:[%s913 + $0x1c] sm:$0xf]
  %v922 = vld [vmem:[%s913 + $0x20] sm:$0xf]
  %v923 = vld [vmem:[%s913 + $0x24] sm:$0xf]
  %v924 = vld [vmem:[%s913 + $0x28] sm:$0xf]
  %v925 = vld [vmem:[%s913 + $0x2c] sm:$0xf]
  %v926 = vld [vmem:[%s913 + $0x30] sm:$0xf]
  %v927 = vld [vmem:[%s913 + $0x34] sm:$0xf]
  %v928 = vld [vmem:[%s913 + $0x38] sm:$0xf]
  %v929 = vld [vmem:[%s913 + $0x3c] sm:$0xf]
  %v930 = vunpack.c.l.b16 %v878
  %v931 = vunpack.c.l.b16 %v888
  %v932 = vunpack.c.l.b16 %v902
  %v933 = vunpack.c.l.b16 %v912
  %v934 = vpack.c.b16 %v931, %v930
  %v935 = vpack.c.b16 %v933, %v932
  %v954 = vunpack.c.l.b16 %v914
  %v955 = vunpack.c.l.b16 %v915
  %v956 = vunpack.c.l.b16 %v916
  %v957 = vunpack.c.l.b16 %v917
  %v958 = vunpack.c.l.b16 %v918
  %v959 = vunpack.c.l.b16 %v919
  %v960 = vunpack.c.l.b16 %v920
  %v961 = vunpack.c.l.b16 %v921
  %v962 = vunpack.c.l.b16 %v922
  %v963 = vunpack.c.l.b16 %v923
  %v964 = vunpack.c.l.b16 %v924
  %v965 = vunpack.c.l.b16 %v925
  %v966 = vunpack.c.l.b16 %v926
  %v967 = vunpack.c.l.b16 %v927
  %v968 = vunpack.c.l.b16 %v928
  %v969 = vunpack.c.l.b16 %v929
  %v970 = vpack.c.b16 %v955, %v954
  %v971 = vpack.c.b16 %v957, %v956
  %v972 = vpack.c.b16 %v959, %v958
  %v973 = vpack.c.b16 %v961, %v960
  %v974 = vpack.c.b16 %v963, %v962
  %v975 = vpack.c.b16 %v965, %v964
  %v976 = vpack.c.b16 %v967, %v966
  %v977 = vpack.c.b16 %v969, %v968
  %986 = vmatprep.subr.bf16.mxu0 0
  %987 = vmatpush1.bf16.msra.mxu0 %v970
  %988 = vmatprep.subr.bf16.mxu0 0
  %989 = vmatpush1.bf16.msra.mxu0 %v971
  %990 = vmatprep.subr.bf16.mxu0 0
  %991 = vmatpush1.bf16.msra.mxu0 %v972
  %992 = vmatprep.subr.bf16.mxu0 0
  %993 = vmatpush1.bf16.msra.mxu0 %v973
  %994 = vmatprep.subr.bf16.mxu0 0
  %995 = vmatpush1.bf16.msra.mxu0 %v974
  %996 = vmatprep.subr.bf16.mxu0 0
  %997 = vmatpush1.bf16.msra.mxu0 %v975
  %998 = vmatprep.subr.bf16.mxu0 0
  %999 = vmatpush1.bf16.msra.mxu0 %v976
  %1000 = vmatprep.subr.bf16.mxu0 0
  %1001 = vmatpush1.bf16.msra.mxu0 %v977
  %1002 = vmatprep.subr.bf16.mxu0 0
  %1003 = vmatpush1.bf16.msra.mxu0 0
  %1004 = vmatprep.subr.bf16.mxu0 0
  %1005 = vmatpush1.bf16.msra.mxu0 0
  %1006 = vmatprep.subr.bf16.mxu0 0
  %1007 = vmatpush1.bf16.msra.mxu0 0
  %1008 = vmatprep.subr.bf16.mxu0 0
  %1009 = vmatpush1.bf16.msra.mxu0 0
  %1010 = vmatprep.subr.bf16.mxu0 0
  %1011 = vmatpush1.bf16.msra.mxu0 0
  %1012 = vmatprep.subr.bf16.mxu0 0
  %1013 = vmatpush1.bf16.msra.mxu0 0
  %1014 = vmatprep.subr.bf16.mxu0 0
  %1015 = vmatpush1.bf16.msra.mxu0 0
  %1016 = vmatprep.subr.bf16.mxu0 0
  %1017 = vmatpush1.bf16.msra.mxu0 0
  %1018 = vmatprep.mubr.bf16.mxu0 0
  %1019 = vmatmul.mubr.bf16.gmra.mrb[0].mxu0 %v934
  %v1020 = vpop.f32.mrb[0].mxu0
  %v1021 = vadd.f32 0.0, %v1020
  %v1022 = vpop.f32.mrb[0].mxu0
  %v1023 = vpop.f32.mrb[0].mxu0
  %v1024 = vadd.f32 0.0, %v1023
  %v1025 = vpop.f32.mrb[0].mxu0
  %1026 = vmatprep.mubr.bf16.mxu0 0
  %1027 = vmatmul.mubr.bf16.gmra.mrb[0].mxu0 %v935
  %v1028 = vpop.f32.mrb[0].mxu0
  %v1029 = vadd.f32 0.0, %v1028
  %v1030 = vpop.f32.mrb[0].mxu0
  %v1031 = vpop.f32.mrb[0].mxu0
  %v1032 = vadd.f32 0.0, %v1031
  %v1033 = vpop.f32.mrb[0].mxu0
  %1034 = vdwg.mxu0
  %v1039 = vunpack.c.l.b16 %v840
  %v1040 = vunpack.c.l.b16 %v841
  %v1041 = vunpack.c.l.b16 %v842
  %v1042 = vunpack.c.l.b16 %v843
  %v1043 = vpack.c.b16 %v1040, %v1039
  %v1044 = vpack.c.b16 %v1042, %v1041
  %v1063 = vunpack.c.l.b16 %v844
  %v1064 = vunpack.c.l.b16 %v845
  %v1065 = vunpack.c.l.b16 %v846
  %v1066 = vunpack.c.l.b16 %v847
  %v1067 = vunpack.c.l.b16 %v848
  %v1068 = vunpack.c.l.b16 %v849
  %v1069 = vunpack.c.l.b16 %v850
  %v1070 = vunpack.c.l.b16 %v851
  %v1071 = vunpack.c.l.b16 %v852
  %v1072 = vunpack.c.l.b16 %v853
  %v1073 = vunpack.c.l.b16 %v854
  %v1074 = vunpack.c.l.b16 %v855
  %v1075 = vunpack.c.l.b16 %v856
  %v1076 = vunpack.c.l.b16 %v857
  %v1077 = vunpack.c.l.b16 %v858
  %v1078 = vunpack.c.l.b16 %v859
  %v1079 = vpack.c.b16 %v1064, %v1063
  %v1080 = vpack.c.b16 %v1066, %v1065
  %v1081 = vpack.c.b16 %v1068, %v1067
  %v1082 = vpack.c.b16 %v1070, %v1069
  %v1083 = vpack.c.b16 %v1072, %v1071
  %v1084 = vpack.c.b16 %v1074, %v1073
  %v1085 = vpack.c.b16 %v1076, %v1075
  %v1086 = vpack.c.b16 %v1078, %v1077
  %1095 = vmatprep.subr.bf16.mxu0 0
  %1096 = vmatpush1.bf16.msra.mxu0 %v1079
  %1097 = vmatprep.subr.bf16.mxu0 0
  %1098 = vmatpush1.bf16.msra.mxu0 %v1080
  %1099 = vmatprep.subr.bf16.mxu0 0
  %1100 = vmatpush1.bf16.msra.mxu0 %v1081
  %1101 = vmatprep.subr.bf16.mxu0 0
  %1102 = vmatpush1.bf16.msra.mxu0 %v1082
  %1103 = vmatprep.subr.bf16.mxu0 0
  %1104 = vmatpush1.bf16.msra.mxu0 %v1083
  %1105 = vmatprep.subr.bf16.mxu0 0
  %1106 = vmatpush1.bf16.msra.mxu0 %v1084
  %1107 = vmatprep.subr.bf16.mxu0 0
  %1108 = vmatpush1.bf16.msra.mxu0 %v1085
  %1109 = vmatprep.subr.bf16.mxu0 0
  %1110 = vmatpush1.bf16.msra.mxu0 %v1086
  %1111 = vmatprep.subr.bf16.mxu0 0
  %1112 = vmatpush1.bf16.msra.mxu0 0
  %1113 = vmatprep.subr.bf16.mxu0 0
  %1114 = vmatpush1.bf16.msra.mxu0 0
  %1115 = vmatprep.subr.bf16.mxu0 0
  %1116 = vmatpush1.bf16.msra.mxu0 0
  %1117 = vmatprep.subr.bf16.mxu0 0
  %1118 = vmatpush1.bf16.msra.mxu0 0
  %1119 = vmatprep.subr.bf16.mxu0 0
  %1120 = vmatpush1.bf16.msra.mxu0 0
  %1121 = vmatprep.subr.bf16.mxu0 0
  %1122 = vmatpush1.bf16.msra.mxu0 0
  %1123 = vmatprep.subr.bf16.mxu0 0
  %1124 = vmatpush1.bf16.msra.mxu0 0
  %1125 = vmatprep.subr.bf16.mxu0 0
  %1126 = vmatpush1.bf16.msra.mxu0 0
  %1127 = vmatprep.mubr.bf16.mxu0 0
  %1128 = vmatmul.mubr.bf16.gmra.mrb[0].mxu0 %v1043
  %v1129 = vpop.f32.mrb[0].mxu0
  %v1130 = vadd.f32 %v1021, %v1129
  %v1131 = vpop.f32.mrb[0].mxu0
  %v1132 = vpop.f32.mrb[0].mxu0
  %v1133 = vadd.f32 %v1024, %v1132
  %v1134 = vpop.f32.mrb[0].mxu0
  %1135 = vmatprep.mubr.bf16.mxu0 0
  %1136 = vmatmul.mubr.bf16.gmra.mrb[0].mxu0 %v1044
  %v1137 = vpop.f32.mrb[0].mxu0
  %v1138 = vadd.f32 %v1029, %v1137
  %v1139 = vpop.f32.mrb[0].mxu0
  %v1140 = vpop.f32.mrb[0].mxu0
  %v1141 = vadd.f32 %v1032, %v1140
  %v1142 = vpop.f32.mrb[0].mxu0
  %1143 = vdwg.mxu0
  %v1144 = vld [vmem:[#allocation2] sm:$0xe]
  %v1145 = vld [vmem:[#allocation2 + $0xc] sm:$0xe]
  %vm1150 = vcmask 1042432
  %vm1151 = vcmask 1046532
  %vm1152 = vmor %vm1150, %vm1151
  %v1153 = vrot.slane %v1144, 5
  %v1154 = vrot.slane %v1153, 4
  %v1155 = vrot.slane %v841, 5
  %v1156 = vsel %vm1152, %v1154, %v1155
  %v1157 = vrot.slane %v1155, 4
  %v1158 = vrot.slane %v860, 5
  %v1159 = vsel %vm1152, %v1157, %v1158
  %v1160 = vrot.slane %v1145, 5
  %v1161 = vrot.slane %v1160, 4
  %v1162 = vrot.slane %v843, 5
  %v1163 = vsel %vm1152, %v1161, %v1162
  %v1164 = vrot.slane %v1162, 4
  %v1165 = vrot.slane %v861, 5
  %v1166 = vsel %vm1152, %v1164, %v1165
  %s1167 = scalar_lea.vmem %s4, 128
  %v1168 = vld [vmem:[%s1167] sm:$0xf]
  %v1169 = vld [vmem:[%s1167 + $0x4] sm:$0xf]
  %v1170 = vld [vmem:[%s1167 + $0x8] sm:$0xf]
  %v1171 = vld [vmem:[%s1167 + $0xc] sm:$0xf]
  %v1172 = vld [vmem:[%s1167 + $0x10] sm:$0xf]
  %v1173 = vld [vmem:[%s1167 + $0x14] sm:$0xf]
  %v1174 = vld [vmem:[%s1167 + $0x18] sm:$0xf]
  %v1175 = vld [vmem:[%s1167 + $0x1c] sm:$0xf]
  %v1176 = vld [vmem:[%s1167 + $0x20] sm:$0xf]
  %v1177 = vld [vmem:[%s1167 + $0x24] sm:$0xf]
  %v1178 = vld [vmem:[%s1167 + $0x28] sm:$0xf]
  %v1179 = vld [vmem:[%s1167 + $0x2c] sm:$0xf]
  %v1180 = vld [vmem:[%s1167 + $0x30] sm:$0xf]
  %v1181 = vld [vmem:[%s1167 + $0x34] sm:$0xf]
  %v1182 = vld [vmem:[%s1167 + $0x38] sm:$0xf]
  %v1183 = vld [vmem:[%s1167 + $0x3c] sm:$0xf]
  %v1184 = vunpack.c.l.b16 %v1156
  %v1185 = vunpack.c.l.b16 %v1159
  %v1186 = vunpack.c.l.b16 %v1163
  %v1187 = vunpack.c.l.b16 %v1166
  %v1188 = vpack.c.b16 %v1185, %v1184
  %v1189 = vpack.c.b16 %v1187, %v1186
  %v1208 = vunpack.c.l.b16 %v1168
  %v1209 = vunpack.c.l.b16 %v1169
  %v1210 = vunpack.c.l.b16 %v1170
  %v1211 = vunpack.c.l.b16 %v1171
  %v1212 = vunpack.c.l.b16 %v1172
  %v1213 = vunpack.c.l.b16 %v1173
  %v1214 = vunpack.c.l.b16 %v1174
  %v1215 = vunpack.c.l.b16 %v1175
  %v1216 = vunpack.c.l.b16 %v1176
  %v1217 = vunpack.c.l.b16 %v1177
  %v1218 = vunpack.c.l.b16 %v1178
  %v1219 = vunpack.c.l.b16 %v1179
  %v1220 = vunpack.c.l.b16 %v1180
  %v1221 = vunpack.c.l.b16 %v1181
  %v1222 = vunpack.c.l.b16 %v1182
  %v1223 = vunpack.c.l.b16 %v1183
  %v1224 = vpack.c.b16 %v1209, %v1208
  %v1225 = vpack.c.b16 %v1211, %v1210
  %v1226 = vpack.c.b16 %v1213, %v1212
  %v1227 = vpack.c.b16 %v1215, %v1214
  %v1228 = vpack.c.b16 %v1217, %v1216
  %v1229 = vpack.c.b16 %v1219, %v1218
  %v1230 = vpack.c.b16 %v1221, %v1220
  %v1231 = vpack.c.b16 %v1223, %v1222
  %1240 = vmatprep.subr.bf16.mxu0 0
  %1241 = vmatpush1.bf16.msra.mxu0 %v1224
  %1242 = vmatprep.subr.bf16.mxu0 0
  %1243 = vmatpush1.bf16.msra.mxu0 %v1225
  %1244 = vmatprep.subr.bf16.mxu0 0
  %1245 = vmatpush1.bf16.msra.mxu0 %v1226
  %1246 = vmatprep.subr.bf16.mxu0 0
  %1247 = vmatpush1.bf16.msra.mxu0 %v1227
  %1248 = vmatprep.subr.bf16.mxu0 0
  %1249 = vmatpush1.bf16.msra.mxu0 %v1228
  %1250 = vmatprep.subr.bf16.mxu0 0
  %1251 = vmatpush1.bf16.msra.mxu0 %v1229
  %1252 = vmatprep.subr.bf16.mxu0 0
  %1253 = vmatpush1.bf16.msra.mxu0 %v1230
  %1254 = vmatprep.subr.bf16.mxu0 0
  %1255 = vmatpush1.bf16.msra.mxu0 %v1231
  %1256 = vmatprep.subr.bf16.mxu0 0
  %1257 = vmatpush1.bf16.msra.mxu0 0
  %1258 = vmatprep.subr.bf16.mxu0 0
  %1259 = vmatpush1.bf16.msra.mxu0 0
  %1260 = vmatprep.subr.bf16.mxu0 0
  %1261 = vmatpush1.bf16.msra.mxu0 0
  %1262 = vmatprep.subr.bf16.mxu0 0
  %1263 = vmatpush1.bf16.msra.mxu0 0
  %1264 = vmatprep.subr.bf16.mxu0 0
  %1265 = vmatpush1.bf16.msra.mxu0 0
  %1266 = vmatprep.subr.bf16.mxu0 0
  %1267 = vmatpush1.bf16.msra.mxu0 0
  %1268 = vmatprep.subr.bf16.mxu0 0
  %1269 = vmatpush1.bf16.msra.mxu0 0
  %1270 = vmatprep.subr.bf16.mxu0 0
  %1271 = vmatpush1.bf16.msra.mxu0 0
  %1272 = vmatprep.mubr.bf16.mxu0 0
  %1273 = vmatmul.mubr.bf16.gmra.mrb[0].mxu0 %v1188
  %v1274 = vpop.f32.mrb[0].mxu0
  %v1275 = vadd.f32 0.0, %v1274
  %v1276 = vpop.f32.mrb[0].mxu0
  %v1277 = vpop.f32.mrb[0].mxu0
  %v1278 = vadd.f32 0.0, %v1277
  %v1279 = vpop.f32.mrb[0].mxu0
  %1280 = vmatprep.mubr.bf16.mxu0 0
  %1281 = vmatmul.mubr.bf16.gmra.mrb[0].mxu0 %v1189
  %v1282 = vpop.f32.mrb[0].mxu0
  %v1283 = vadd.f32 0.0, %v1282
  %v1284 = vpop.f32.mrb[0].mxu0
  %v1285 = vpop.f32.mrb[0].mxu0
  %v1286 = vadd.f32 0.0, %v1285
  %v1287 = vpop.f32.mrb[0].mxu0
  %1288 = vdwg.mxu0
  %v1289 = vadd.f32 %v1130, %v1275
  %v1290 = vadd.f32 %v1133, %v1278
  %v1291 = vadd.f32 %v1138, %v1283
  %v1292 = vadd.f32 %v1141, %v1286
  %v1293 = vadd.f32 %v1289, %v1290
  %v1294 = vadd.f32 %v1293, %v1291
  %v1295 = vadd.f32 %v1294, %v1292
  %v1296 = vrot.slane %v1295, 4
  %v1297 = vadd.f32 %v1295, %v1296
  %v1298 = vrot.slane %v1297, 2
  %v1299 = vadd.f32 %v1297, %v1298
  %v1300 = vrot.slane %v1299, 1
  %v1301 = vadd.f32 %v1299, %v1300
  %v1302 = vmul.f32 %v1289, %v1289
  %v1303 = vmul.f32 %v1290, %v1290
  %v1304 = vmul.f32 %v1291, %v1291
  %v1305 = vmul.f32 %v1292, %v1292
  %v1306 = vadd.f32 %v1302, %v1303
  %v1307 = vadd.f32 %v1306, %v1304
  %v1308 = vadd.f32 %v1307, %v1305
  %v1309 = vrot.slane %v1308, 4
  %v1310 = vadd.f32 %v1308, %v1309
  %v1311 = vrot.slane %v1310, 2
  %v1312 = vadd.f32 %v1310, %v1311
  %v1313 = vrot.slane %v1312, 1
  %v1314 = vadd.f32 %v1312, %v1313
  %1315 = vmatprep.subr.mxu0 0.0
  %1316 = vmatpush1.msra.mxu0 %v33
  %1317 = vmatprep.subr.mxu0 0.0
  %1318 = vmatpush1.msra.mxu0 %v34
  %1319 = vmatprep.subr.mxu0 0.0
  %1320 = vmatpush1.msra.mxu0 %v35
  %1321 = vmatprep.subr.mxu0 0.0
  %1322 = vmatpush1.msra.mxu0 %v36
  %1323 = vmatprep.subr.mxu0 0.0
  %1324 = vmatpush1.msra.mxu0 %v37
  %1325 = vmatprep.subr.mxu0 0.0
  %1326 = vmatpush1.msra.mxu0 %v38
  %1327 = vmatprep.subr.mxu0 0.0
  %1328 = vmatpush1.msra.mxu0 %v39
  %1329 = vmatprep.subr.mxu0 0.0
  %1330 = vmatpush1.msra.mxu0 %v40
  %1331 = vmatprep.subr.mxu0 0.0
  %1332 = vmatpush1.msra.mxu0 %v41
  %1333 = vmatprep.subr.mxu0 0.0
  %1334 = vmatpush1.msra.mxu0 %v42
  %1335 = vmatprep.subr.mxu0 0.0
  %1336 = vmatpush1.msra.mxu0 %v43
  %1337 = vmatprep.subr.mxu0 0.0
  %1338 = vmatpush1.msra.mxu0 %v44
  %1339 = vmatprep.subr.mxu0 0.0
  %1340 = vmatpush1.msra.mxu0 %v45
  %1341 = vmatprep.subr.mxu0 0.0
  %1342 = vmatpush1.msra.mxu0 %v46
  %1343 = vmatprep.subr.mxu0 0.0
  %1344 = vmatpush1.msra.mxu0 %v47
  %1345 = vmatprep.subr.mxu0 0.0
  %1346 = vmatpush1.msra.mxu0 %v48
  %1347 = vmatprep.subr.mxu0 0.0
  %1348 = vmatpush1.msra.mxu0 0.0
  %1349 = vmatprep.subr.mxu0 0.0
  %1350 = vmatpush1.msra.mxu0 0.0
  %1351 = vmatprep.subr.mxu0 0.0
  %1352 = vmatpush1.msra.mxu0 0.0
  %1353 = vmatprep.subr.mxu0 0.0
  %1354 = vmatpush1.msra.mxu0 0.0
  %1355 = vmatprep.subr.mxu0 0.0
  %1356 = vmatpush1.msra.mxu0 0.0
  %1357 = vmatprep.subr.mxu0 0.0
  %1358 = vmatpush1.msra.mxu0 0.0
  %1359 = vmatprep.subr.mxu0 0.0
  %1360 = vmatpush1.msra.mxu0 0.0
  %1361 = vmatprep.subr.mxu0 0.0
  %1362 = vmatpush1.msra.mxu0 0.0
  %1363 = vmatprep.subr.mxu0 0.0
  %1364 = vmatpush1.msra.mxu0 0.0
  %1365 = vmatprep.subr.mxu0 0.0
  %1366 = vmatpush1.msra.mxu0 0.0
  %1367 = vmatprep.subr.mxu0 0.0
  %1368 = vmatpush1.msra.mxu0 0.0
  %1369 = vmatprep.subr.mxu0 0.0
  %1370 = vmatpush1.msra.mxu0 0.0
  %1371 = vmatprep.subr.mxu0 0.0
  %1372 = vmatpush1.msra.mxu0 0.0
  %1373 = vmatprep.subr.mxu0 0.0
  %1374 = vmatpush1.msra.mxu0 0.0
  %1375 = vmatprep.subr.mxu0 0.0
  %1376 = vmatpush1.msra.mxu0 0.0
  %1377 = vmatprep.subr.mxu0 0.0
  %1378 = vmatpush1.msra.mxu0 0.0
  %1379 = vmatprep.mubr.f32.mxu0 0.0
  %1380 = vmatmul.mubr.f32.gmra.mrb[0].mxu0 %v1301
  %v1381 = vpop.f32.mrb[0].mxu0
  %v1382 = vadd.f32 0.0, %v1381
  %v1383 = vpop.f32.mrb[0].mxu0
  %1384 = vdwg.mxu0
  %1385 = vmatprep.subr.mxu0 0.0
  %1386 = vmatpush1.msra.mxu0 %v33
  %1387 = vmatprep.subr.mxu0 0.0
  %1388 = vmatpush1.msra.mxu0 %v34
  %1389 = vmatprep.subr.mxu0 0.0
  %1390 = vmatpush1.msra.mxu0 %v35
  %1391 = vmatprep.subr.mxu0 0.0
  %1392 = vmatpush1.msra.mxu0 %v36
  %1393 = vmatprep.subr.mxu0 0.0
  %1394 = vmatpush1.msra.mxu0 %v37
  %1395 = vmatprep.subr.mxu0 0.0
  %1396 = vmatpush1.msra.mxu0 %v38
  %1397 = vmatprep.subr.mxu0 0.0
  %1398 = vmatpush1.msra.mxu0 %v39
  %1399 = vmatprep.subr.mxu0 0.0
  %1400 = vmatpush1.msra.mxu0 %v40
  %1401 = vmatprep.subr.mxu0 0.0
  %1402 = vmatpush1.msra.mxu0 %v41
  %1403 = vmatprep.subr.mxu0 0.0
  %1404 = vmatpush1.msra.mxu0 %v42
  %1405 = vmatprep.subr.mxu0 0.0
  %1406 = vmatpush1.msra.mxu0 %v43
  %1407 = vmatprep.subr.mxu0 0.0
  %1408 = vmatpush1.msra.mxu0 %v44
  %1409 = vmatprep.subr.mxu0 0.0
  %1410 = vmatpush1.msra.mxu0 %v45
  %1411 = vmatprep.subr.mxu0 0.0
  %1412 = vmatpush1.msra.mxu0 %v46
  %1413 = vmatprep.subr.mxu0 0.0
  %1414 = vmatpush1.msra.mxu0 %v47
  %1415 = vmatprep.subr.mxu0 0.0
  %1416 = vmatpush1.msra.mxu0 %v48
  %1417 = vmatprep.subr.mxu0 0.0
  %1418 = vmatpush1.msra.mxu0 0.0
  %1419 = vmatprep.subr.mxu0 0.0
  %1420 = vmatpush1.msra.mxu0 0.0
  %1421 = vmatprep.subr.mxu0 0.0
  %1422 = vmatpush1.msra.mxu0 0.0
  %1423 = vmatprep.subr.mxu0 0.0
  %1424 = vmatpush1.msra.mxu0 0.0
  %1425 = vmatprep.subr.mxu0 0.0
  %1426 = vmatpush1.msra.mxu0 0.0
  %1427 = vmatprep.subr.mxu0 0.0
  %1428 = vmatpush1.msra.mxu0 0.0
  %1429 = vmatprep.subr.mxu0 0.0
  %1430 = vmatpush1.msra.mxu0 0.0
  %1431 = vmatprep.subr.mxu0 0.0
  %1432 = vmatpush1.msra.mxu0 0.0
  %1433 = vmatprep.subr.mxu0 0.0
  %1434 = vmatpush1.msra.mxu0 0.0
  %1435 = vmatprep.subr.mxu0 0.0
  %1436 = vmatpush1.msra.mxu0 0.0
  %1437 = vmatprep.subr.mxu0 0.0
  %1438 = vmatpush1.msra.mxu0 0.0
  %1439 = vmatprep.subr.mxu0 0.0
  %1440 = vmatpush1.msra.mxu0 0.0
  %1441 = vmatprep.subr.mxu0 0.0
  %1442 = vmatpush1.msra.mxu0 0.0
  %1443 = vmatprep.subr.mxu0 0.0
  %1444 = vmatpush1.msra.mxu0 0.0
  %1445 = vmatprep.subr.mxu0 0.0
  %1446 = vmatpush1.msra.mxu0 0.0
  %1447 = vmatprep.subr.mxu0 0.0
  %1448 = vmatpush1.msra.mxu0 0.0
  %1449 = vmatprep.mubr.f32.mxu0 0.0
  %1450 = vmatmul.mubr.f32.gmra.mrb[0].mxu0 %v1314
  %v1451 = vpop.f32.mrb[0].mxu0
  %v1452 = vadd.f32 0.0, %v1451
  %v1453 = vpop.f32.mrb[0].mxu0
  %1454 = vdwg.mxu0
  %v1455 = vmul.f32 %v1382, 0.001953125
  %v1456 = vmul.f32 %v1452, 0.001953125
  %v1457 = vmul.f32 %v1455, %v1455
  %v1458 = vsub.f32 %v1456, %v1457
  %v1459 = vld [vmem:[%s5] sm:$0x1]
  %v1460 = vadd.f32 %v1458, 1e-05
  %v1461 = vrsqrt.pop %v1460
  %v1462 = vmul.f32 %v1459, %v1461
  %v1463 = vld [vmem:[%s6] sm:$0x1]
  %v1464 = vmul.f32 %v1455, %v1462
  %v1465 = vsub.f32 %v1463, %v1464
  %v1467 = vsel %vm586, %v1462, 0
  %1469 = vmatprep.subr.mxu0 0.0
  %1470 = vmatpush1.msra.mxu0 %v49
  %1471 = vmatprep.subr.mxu0 0.0
  %1472 = vmatpush1.msra.mxu0 0.0
  %1473 = vmatprep.subr.mxu0 0.0
  %1474 = vmatpush1.msra.mxu0 0.0
  %1475 = vmatprep.subr.mxu0 0.0
  %1476 = vmatpush1.msra.mxu0 0.0
  %1477 = vmatprep.subr.mxu0 0.0
  %1478 = vmatpush1.msra.mxu0 0.0
  %1479 = vmatprep.subr.mxu0 0.0
  %1480 = vmatpush1.msra.mxu0 0.0
  %1481 = vmatprep.subr.mxu0 0.0
  %1482 = vmatpush1.msra.mxu0 0.0
  %1483 = vmatprep.subr.mxu0 0.0
  %1484 = vmatpush1.msra.mxu0 0.0
  %1485 = vmatprep.subr.mxu0 0.0
  %1486 = vmatpush1.msra.mxu0 0.0
  %1487 = vmatprep.subr.mxu0 0.0
  %1488 = vmatpush1.msra.mxu0 0.0
  %1489 = vmatprep.subr.mxu0 0.0
  %1490 = vmatpush1.msra.mxu0 0.0
  %1491 = vmatprep.subr.mxu0 0.0
  %1492 = vmatpush1.msra.mxu0 0.0
  %1493 = vmatprep.subr.mxu0 0.0
  %1494 = vmatpush1.msra.mxu0 0.0
  %1495 = vmatprep.subr.mxu0 0.0
  %1496 = vmatpush1.msra.mxu0 0.0
  %1497 = vmatprep.subr.mxu0 0.0
  %1498 = vmatpush1.msra.mxu0 0.0
  %1499 = vmatprep.subr.mxu0 0.0
  %1500 = vmatpush1.msra.mxu0 0.0
  %1501 = vmatprep.subr.mxu0 0.0
  %1502 = vmatpush1.msra.mxu0 0.0
  %1503 = vmatprep.subr.mxu0 0.0
  %1504 = vmatpush1.msra.mxu0 0.0
  %1505 = vmatprep.subr.mxu0 0.0
  %1506 = vmatpush1.msra.mxu0 0.0
  %1507 = vmatprep.subr.mxu0 0.0
  %1508 = vmatpush1.msra.mxu0 0.0
  %1509 = vmatprep.subr.mxu0 0.0
  %1510 = vmatpush1.msra.mxu0 0.0
  %1511 = vmatprep.subr.mxu0 0.0
  %1512 = vmatpush1.msra.mxu0 0.0
  %1513 = vmatprep.subr.mxu0 0.0
  %1514 = vmatpush1.msra.mxu0 0.0
  %1515 = vmatprep.subr.mxu0 0.0
  %1516 = vmatpush1.msra.mxu0 0.0
  %1517 = vmatprep.subr.mxu0 0.0
  %1518 = vmatpush1.msra.mxu0 0.0
  %1519 = vmatprep.subr.mxu0 0.0
  %1520 = vmatpush1.msra.mxu0 0.0
  %1521 = vmatprep.subr.mxu0 0.0
  %1522 = vmatpush1.msra.mxu0 0.0
  %1523 = vmatprep.subr.mxu0 0.0
  %1524 = vmatpush1.msra.mxu0 0.0
  %1525 = vmatprep.subr.mxu0 0.0
  %1526 = vmatpush1.msra.mxu0 0.0
  %1527 = vmatprep.subr.mxu0 0.0
  %1528 = vmatpush1.msra.mxu0 0.0
  %1529 = vmatprep.subr.mxu0 0.0
  %1530 = vmatpush1.msra.mxu0 0.0
  %1531 = vmatprep.subr.mxu0 0.0
  %1532 = vmatpush1.msra.mxu0 0.0
  %1533 = vmatprep.mubr.f32.mxu0 0.0
  %1534 = vmatmul.mubr.f32.gmra.mrb[0].mxu0 %v1467
  %v1535 = vpop.f32.mrb[0].mxu0
  %v1536 = vadd.f32 0.0, %v1535
  %v1537 = vpop.f32.mrb[0].mxu0
  %1538 = vdwg.mxu0
  %v1540 = vsel %vm586, %v1465, 0
  %1542 = vmatprep.subr.mxu0 0.0
  %1543 = vmatpush1.msra.mxu0 %v49
  %1544 = vmatprep.subr.mxu0 0.0
  %1545 = vmatpush1.msra.mxu0 0.0
  %1546 = vmatprep.subr.mxu0 0.0
  %1547 = vmatpush1.msra.mxu0 0.0
  %1548 = vmatprep.subr.mxu0 0.0
  %1549 = vmatpush1.msra.mxu0 0.0
  %1550 = vmatprep.subr.mxu0 0.0
  %1551 = vmatpush1.msra.mxu0 0.0
  %1552 = vmatprep.subr.mxu0 0.0
  %1553 = vmatpush1.msra.mxu0 0.0
  %1554 = vmatprep.subr.mxu0 0.0
  %1555 = vmatpush1.msra.mxu0 0.0
  %1556 = vmatprep.subr.mxu0 0.0
  %1557 = vmatpush1.msra.mxu0 0.0
  %1558 = vmatprep.subr.mxu0 0.0
  %1559 = vmatpush1.msra.mxu0 0.0
  %1560 = vmatprep.subr.mxu0 0.0
  %1561 = vmatpush1.msra.mxu0 0.0
  %1562 = vmatprep.subr.mxu0 0.0
  %1563 = vmatpush1.msra.mxu0 0.0
  %1564 = vmatprep.subr.mxu0 0.0
  %1565 = vmatpush1.msra.mxu0 0.0
  %1566 = vmatprep.subr.mxu0 0.0
  %1567 = vmatpush1.msra.mxu0 0.0
  %1568 = vmatprep.subr.mxu0 0.0
  %1569 = vmatpush1.msra.mxu0 0.0
  %1570 = vmatprep.subr.mxu0 0.0
  %1571 = vmatpush1.msra.mxu0 0.0
  %1572 = vmatprep.subr.mxu0 0.0
  %1573 = vmatpush1.msra.mxu0 0.0
  %1574 = vmatprep.subr.mxu0 0.0
  %1575 = vmatpush1.msra.mxu0 0.0
  %1576 = vmatprep.subr.mxu0 0.0
  %1577 = vmatpush1.msra.mxu0 0.0
  %1578 = vmatprep.subr.mxu0 0.0
  %1579 = vmatpush1.msra.mxu0 0.0
  %1580 = vmatprep.subr.mxu0 0.0
  %1581 = vmatpush1.msra.mxu0 0.0
  %1582 = vmatprep.subr.mxu0 0.0
  %1583 = vmatpush1.msra.mxu0 0.0
  %1584 = vmatprep.subr.mxu0 0.0
  %1585 = vmatpush1.msra.mxu0 0.0
  %1586 = vmatprep.subr.mxu0 0.0
  %1587 = vmatpush1.msra.mxu0 0.0
  %1588 = vmatprep.subr.mxu0 0.0
  %1589 = vmatpush1.msra.mxu0 0.0
  %1590 = vmatprep.subr.mxu0 0.0
  %1591 = vmatpush1.msra.mxu0 0.0
  %1592 = vmatprep.subr.mxu0 0.0
  %1593 = vmatpush1.msra.mxu0 0.0
  %1594 = vmatprep.subr.mxu0 0.0
  %1595 = vmatpush1.msra.mxu0 0.0
  %1596 = vmatprep.subr.mxu0 0.0
  %1597 = vmatpush1.msra.mxu0 0.0
  %1598 = vmatprep.subr.mxu0 0.0
  %1599 = vmatpush1.msra.mxu0 0.0
  %1600 = vmatprep.subr.mxu0 0.0
  %1601 = vmatpush1.msra.mxu0 0.0
  %1602 = vmatprep.subr.mxu0 0.0
  %1603 = vmatpush1.msra.mxu0 0.0
  %1604 = vmatprep.subr.mxu0 0.0
  %1605 = vmatpush1.msra.mxu0 0.0
  %1606 = vmatprep.mubr.f32.mxu0 0.0
  %1607 = vmatmul.mubr.f32.gmra.mrb[0].mxu0 %v1540
  %v1608 = vpop.f32.mrb[0].mxu0
  %v1609 = vadd.f32 0.0, %v1608
  %v1610 = vpop.f32.mrb[0].mxu0
  %1611 = vdwg.mxu0
  %v1612 = vlaneseq
  %v1613 = vshrl.u32 %v1612, 7
  %v1614 = vsub.s32 0, %v1613
  %v1615 = vrot.slane %v1536, %v1614
  %v1616 = vmul.f32 %v1289, %v1615
  %v1617 = vmul.f32 %v1290, %v1615
  %v1618 = vmul.f32 %v1291, %v1615
  %v1619 = vmul.f32 %v1292, %v1615
  %v1620 = vlaneseq
  %v1621 = vshrl.u32 %v1620, 7
  %v1622 = vsub.s32 0, %v1621
  %v1623 = vrot.slane %v1609, %v1622
  %v1624 = vadd.f32 %v1616, %v1623
  %v1625 = vadd.f32 %v1617, %v1623
  %v1626 = vadd.f32 %v1618, %v1623
  %v1627 = vadd.f32 %v1619, %v1623
  %v1628 = vld [vmem:[%s0 + $0x1] sm:$0xff]
  %v1629 = vld [vmem:[%s0 + $0x9] sm:$0xff]
  %v1630 = vld [vmem:[%s0 + $0x19] sm:$0xff]
  %v1631 = vld [vmem:[%s0 + $0x21] sm:$0xff]
  %v1632 = vadd.f32 %v1624, %v1628
  %v1633 = vadd.f32 %v1625, %v1629
  %v1634 = vadd.f32 %v1626, %v1630
  %v1635 = vadd.f32 %v1627, %v1631
  %v1636 = vmax.f32 %v1632, 0.0
  %v1637 = vmax.f32 %v1633, 0.0
  %v1638 = vmax.f32 %v1634, 0.0
  %v1639 = vmax.f32 %v1635, 0.0
  %1640 = vst [vmem:[%s9] sm:$0xff] %v1636
  %1641 = vst [vmem:[%s9 + $0x8] sm:$0xff] %v1637
  %1642 = vst [vmem:[%s9 + $0x10] sm:$0xff] %v1638
  %1643 = vst [vmem:[%s9 + $0x18] sm:$0xff] %v1639
  // Predicated region
  $region38: #{basic_block.1} parent=0 // pred_check
    _
  $region39: #{basic_block.1} parent=0 // pred_check_branch
    %1645 = sbr.rel (0) target = $region41
  $region40: #{basic_block.1} parent=0 // pred_region
    _
  $region41: #{basic_block.1} parent=0 // pred_fallthru
    _
  // Predicated region
  $region42: #{basic_block.1} parent=0 // pred_check
    _
  $region43: #{basic_block.1} parent=0 // pred_check_branch
    %1647 = sbr.rel (0) target = $region45
  $region44: #{basic_block.1} parent=0 // pred_region
    _
  $region45: #{basic_block.1} parent=0 // pred_fallthru
    _

</llo_original>
